<compile_context>
chip_gen: v7x
topology: tpu7x:2x2x1
jax: 0.10.0
libtpu: 0.0.40
codegen_flags: <defaults>
</compile_context>

<pallas_src>
import jax
import jax.numpy as jnp
import numpy as np
from jax import lax
from jax.experimental import pallas as pl
from jax.experimental.pallas import tpu as pltpu


def _round_up(x, m):
    return ((x + m - 1) // m) * m


def _scale_pred_kernel(x_ref, w1_ref, bias_ref, w2_ref, b2_ref, o_ref):
    # x_ref   : (1, H, W, C)        bf16 input tile for one batch element (unpadded)
    # w1_ref  : (3, 3*C, Cmid)      bf16 3x3 conv weights, BN scale folded, dx-major rows
    # bias_ref: (1, Cmid)           f32 folded BatchNorm bias
    # w2_ref  : (Cmid, Cout_pad)    bf16 1x1 conv weights, zero-padded to 128 lanes
    # b2_ref  : (1, Cout_pad)       f32 1x1 conv bias, zero-padded
    # o_ref   : (1, H*W, Cout_pad)  f32 lane-dense flat output
    H = x_ref.shape[1]
    W = x_ref.shape[2]
    C = x_ref.shape[3]
    K3 = w1_ref.shape[1]          # 3*C
    Cmid = w1_ref.shape[2]

    x = x_ref[0]                                              # (H, W, C) bf16

    # Build the 3x3 halo in VMEM (no wrapper-side HBM pad pass):
    # width-pad, concat the 3 dx taps along channels, then height-pad.
    zc = jnp.zeros((H, 1, C), x.dtype)
    xw = jnp.concatenate([zc, x, zc], axis=1)                 # (H, W+2, C)
    x3 = jnp.concatenate(
        [xw[:, 0:W, :], xw[:, 1:W + 1, :], xw[:, 2:W + 2, :]], axis=-1
    )                                                         # (H, W, 3C)
    zr = jnp.zeros((1, W, K3), x.dtype)
    x3p = jnp.concatenate([zr, x3, zr], axis=0)               # (H+2, W, 3C)

    # 3x3 conv as 3 MXU matmuls with K = 3*C (dx taps folded into K), f32 accumulate.
    acc = jnp.zeros((H * W, Cmid), jnp.float32)
    for dy in range(3):
        patch = x3p[dy:dy + H].reshape(H * W, K3)             # (H*W, 3C) bf16
        acc = acc + jnp.dot(patch, w1_ref[dy],
                            preferred_element_type=jnp.float32)

    # Folded-BN bias + LeakyReLU(0.1), f32 epilogue on the f32 accumulator.
    h = acc + bias_ref[...]
    h = jnp.where(h > 0, h, 0.1 * h)

    # 1x1 conv: lane-dense (Cout padded to 128) matmul + bias.
    out = jnp.dot(h.astype(w2_ref.dtype), w2_ref[...],
                  preferred_element_type=jnp.float32) + b2_ref[...]
    o_ref[0] = out


def scale_prediction(x_nchw, params, num_classes):
    """x_nchw: (B, C, H, W) float32. Returns (B, 3, H, W, num_classes + 5)."""
    w1, gamma, beta, run_mean, run_var, w2, b2 = params
    B, C, H, W = x_nchw.shape
    Cmid = 2 * C
    Cout = 3 * (num_classes + 5)
    Cout_pad = _round_up(Cout, 128)
    eps = 1e-5

    # Fold BN (inference mode) into the 3x3 conv weights; only a bias-add remains
    # inside the kernel.
    scale = gamma / jnp.sqrt(run_var + eps)                   # (Cmid,)
    bias2d = (beta - run_mean * scale).reshape(1, Cmid).astype(jnp.float32)
    w1_folded = (w1 * scale[None, None, None, :]).reshape(3, 3 * C, Cmid)
    w1_bf16 = w1_folded.astype(jnp.bfloat16)

    # Zero-pad the 1x1 conv to a lane-dense (multiple of 128) output width.
    w2_pad = jnp.zeros((Cmid, Cout_pad), jnp.float32).at[:, :Cout].set(w2)
    w2_bf16 = w2_pad.astype(jnp.bfloat16)
    b2_pad = jnp.zeros((1, Cout_pad), jnp.float32).at[0, :Cout].set(b2)

    # NCHW -> NHWC; bf16 halves HBM/VMEM traffic for the MXU inputs.
    x_nhwc = jnp.transpose(x_nchw, (0, 2, 3, 1)).astype(jnp.bfloat16)

    # Scoped-VMEM limit sized from the actual (double-buffered) block footprint.
    bf16_b, f32_b = 2, 4
    block_bytes = (
        2 * H * W * C * bf16_b                # input block (x2 buffers)
        + 2 * 3 * 3 * C * Cmid * bf16_b       # w1
        + 2 * Cmid * f32_b                    # BN bias
        + 2 * Cmid * Cout_pad * bf16_b        # w2
        + 2 * Cout_pad * f32_b                # b2
        + 2 * H * W * Cout_pad * f32_b        # output block (x2 buffers)
        + (H + 2) * W * 3 * C * bf16_b        # in-kernel padded/concat input
        + 2 * H * W * Cmid * f32_b            # f32 accumulator + activation
        + H * W * Cout_pad * f32_b            # f32 output tile before store
    )
    vmem_limit = int(min(max(2 * block_bytes, 16 * 1024 * 1024), 64 * 1024 * 1024))

    out_flat = pl.pallas_call(
        _scale_pred_kernel,
        out_shape=jax.ShapeDtypeStruct((B, H * W, Cout_pad), jnp.float32),
        grid=(B,),
        in_specs=[
            pl.BlockSpec((1, H, W, C), lambda b: (b, 0, 0, 0)),
            pl.BlockSpec((3, 3 * C, Cmid), lambda b: (0, 0, 0)),
            pl.BlockSpec((1, Cmid), lambda b: (0, 0)),
            pl.BlockSpec((Cmid, Cout_pad), lambda b: (0, 0)),
            pl.BlockSpec((1, Cout_pad), lambda b: (0, 0)),
        ],
        out_specs=pl.BlockSpec((1, H * W, Cout_pad), lambda b: (b, 0, 0)),
        compiler_params=pltpu.CompilerParams(
            dimension_semantics=("parallel",),
            vmem_limit_bytes=vmem_limit,
        ),
    )(x_nhwc, w1_bf16, bias2d, w2_bf16, b2_pad)

    # Drop the lane padding, then channel c = anchor*(nc+5) + k:
    # (B, H*W, Cout) -> (B, H, W, 3, nc+5) -> (B, 3, H, W, nc+5)
    out = out_flat[:, :, :Cout].reshape(B, H, W, 3, num_classes + 5)
    return jnp.transpose(out, (0, 3, 1, 2, 4))


def reference_forward(x_nchw, params, num_classes):
    """Pure-JAX f32 reference mirroring the PyTorch module (eval-mode BN)."""
    w1, gamma, beta, run_mean, run_var, w2, b2 = params
    B, C, H, W = x_nchw.shape
    Cmid = 2 * C
    Cout = 3 * (num_classes + 5)
    eps = 1e-5

    y = lax.conv_general_dilated(
        x_nchw, w1, window_strides=(1, 1), padding=((1, 1), (1, 1)),
        dimension_numbers=("NCHW", "HWIO", "NCHW"))
    y = (y - run_mean[None, :, None, None]) / jnp.sqrt(run_var + eps)[None, :, None, None]
    y = y * gamma[None, :, None, None] + beta[None, :, None, None]
    y = jnp.where(y > 0, y, 0.1 * y)
    w2_hwio = w2.reshape(1, 1, Cmid, Cout)
    y = lax.conv_general_dilated(
        y, w2_hwio, window_strides=(1, 1), padding="VALID",
        dimension_numbers=("NCHW", "HWIO", "NCHW"))
    y = y + b2[None, :, None, None]
    y = y.reshape(B, 3, num_classes + 5, H, W)
    return jnp.transpose(y, (0, 1, 3, 4, 2))


def init_params(key, in_channels, num_classes):
    C = in_channels
    Cmid = 2 * C
    Cout = 3 * (num_classes + 5)
    k1, k2, k3, k4, k5, k6 = jax.random.split(key, 6)
    w1 = jax.random.normal(k1, (3, 3, C, Cmid), jnp.float32) * 0.1     # HWIO
    gamma = 1.0 + 0.1 * jax.random.normal(k2, (Cmid,), jnp.float32)
    beta = 0.1 * jax.random.normal(k3, (Cmid,), jnp.float32)
    run_mean = 0.05 * jax.random.normal(k4, (Cmid,), jnp.float32)
    run_var = 1.0 + 0.1 * jax.random.uniform(k5, (Cmid,), jnp.float32)
    w2 = jax.random.normal(k6, (Cmid, Cout), jnp.float32) * 0.1
    b2 = jnp.linspace(-0.5, 0.5, Cout, dtype=jnp.float32)
    return (w1, gamma, beta, run_mean, run_var, w2, b2)


if __name__ == "__main__":
    B, C, H, W = 2, 4, 16, 16
    num_classes = 3

    key = jax.random.PRNGKey(0)
    kx, kp = jax.random.split(key)
    x = jax.random.normal(kx, (B, C, H, W), jnp.float32)
    params = init_params(kp, C, num_classes)

    out = jax.block_until_ready(scale_prediction(x, params, num_classes))
    ref = jax.block_until_ready(reference_forward(x, params, num_classes))

    assert out.shape == (B, 3, H, W, num_classes + 5), out.shape
    # bf16 MXU inputs (f32 accumulation) -> slightly looser tolerance vs f32 reference.
    np.testing.assert_allclose(np.asarray(out), np.asarray(ref), rtol=2e-2, atol=2e-2)
    print("KERNEL_OK")
</pallas_src>

<mosaic_0001>
module attributes {stable_mosaic.version = 11 : i64} {
  func.func @_scale_pred_kernel(%arg0: i32, %arg1: memref<1x16x16x4xbf16, #tpu.memory_space<vmem>>, %arg2: memref<3x12x8xbf16, #tpu.memory_space<vmem>>, %arg3: memref<1x8xf32, #tpu.memory_space<vmem>>, %arg4: memref<8x128xbf16, #tpu.memory_space<vmem>>, %arg5: memref<1x128xf32, #tpu.memory_space<vmem>>, %arg6: memref<1x256x128xf32, #tpu.memory_space<vmem>>) attributes {dimension_semantics = [#tpu.dimension_semantics<parallel>], iteration_bounds = array<i64: 2>, scalar_prefetch = 0 : i64, scratch_operands = 0 : i64, tpu.core_type = #tpu.core_type<tc>, window_params = [{transform_indices = @transform_0, window_bounds = array<i64: 1, 16, 16, 4>}, {pipeline_mode = #tpu.pipeline_mode<synchronous>, transform_indices = @transform_1, window_bounds = array<i64: 3, 12, 8>}, {pipeline_mode = #tpu.pipeline_mode<synchronous>, transform_indices = @transform_2, window_bounds = array<i64: 1, 8>}, {pipeline_mode = #tpu.pipeline_mode<synchronous>, transform_indices = @transform_3, window_bounds = array<i64: 8, 128>}, {pipeline_mode = #tpu.pipeline_mode<synchronous>, transform_indices = @transform_4, window_bounds = array<i64: 1, 128>}, {transform_indices = @transform_5, window_bounds = array<i64: 1, 256, 128>}]} {
    %c0 = arith.constant 0 : index
    %c0_0 = arith.constant 0 : index
    %c0_1 = arith.constant 0 : index
    %c0_2 = arith.constant 0 : index
    %0 = vector.load %arg1[%c0, %c0_0, %c0_1, %c0_2] : memref<1x16x16x4xbf16, #tpu.memory_space<vmem>>, vector<1x16x16x4xbf16>
    %1 = vector.shape_cast %0 : vector<1x16x16x4xbf16> to vector<16x16x4xbf16>
    %cst = arith.constant 0.000000e+00 : bf16
    %2 = vector.broadcast %cst : bf16 to vector<16x1x4xbf16>
    %3 = tpu.concatenate %2, %1, %2 in 1 : vector<16x1x4xbf16>, vector<16x16x4xbf16>, vector<16x1x4xbf16> -> vector<16x18x4xbf16>
    %4 = vector.extract_strided_slice %3 {offsets = [0, 0, 0], sizes = [16, 16, 4], strides = [1, 1, 1]} : vector<16x18x4xbf16> to vector<16x16x4xbf16>
    %5 = vector.extract_strided_slice %3 {offsets = [0, 1, 0], sizes = [16, 16, 4], strides = [1, 1, 1]} : vector<16x18x4xbf16> to vector<16x16x4xbf16>
    %6 = vector.extract_strided_slice %3 {offsets = [0, 2, 0], sizes = [16, 16, 4], strides = [1, 1, 1]} : vector<16x18x4xbf16> to vector<16x16x4xbf16>
    %7 = tpu.concatenate %4, %5, %6 in 2 : vector<16x16x4xbf16>, vector<16x16x4xbf16>, vector<16x16x4xbf16> -> vector<16x16x12xbf16>
    %cst_3 = arith.constant 0.000000e+00 : bf16
    %8 = vector.broadcast %cst_3 : bf16 to vector<1x16x12xbf16>
    %9 = tpu.concatenate %8, %7, %8 in 0 : vector<1x16x12xbf16>, vector<16x16x12xbf16>, vector<1x16x12xbf16> -> vector<18x16x12xbf16>
    %cst_4 = arith.constant 0.000000e+00 : f32
    %10 = vector.broadcast %cst_4 : f32 to vector<256x8xf32>
    %11 = vector.extract_strided_slice %9 {offsets = [0, 0, 0], sizes = [16, 16, 12], strides = [1, 1, 1]} : vector<18x16x12xbf16> to vector<16x16x12xbf16>
    %12 = vector.shape_cast %11 : vector<16x16x12xbf16> to vector<256x12xbf16>
    %c0_5 = arith.constant 0 : index
    %c0_6 = arith.constant 0 : index
    %c0_7 = arith.constant 0 : index
    %13 = vector.load %arg2[%c0_5, %c0_6, %c0_7] : memref<3x12x8xbf16, #tpu.memory_space<vmem>>, vector<1x12x8xbf16>
    %14 = vector.shape_cast %13 : vector<1x12x8xbf16> to vector<12x8xbf16>
    %cst_8 = arith.constant dense<0.000000e+00> : vector<256x8xf32>
    %15 = tpu.matmul %12, %14, %cst_8 {dimension_numbers = #tpu.dot_dimension_numbers<[1], [0], [0], [1], [0, 0, 1, 1], [], []>} : vector<256x12xbf16>, vector<12x8xbf16>, vector<256x8xf32> -> vector<256x8xf32>
    %16 = arith.addf %10, %15 : vector<256x8xf32>
    %17 = vector.extract_strided_slice %9 {offsets = [1, 0, 0], sizes = [16, 16, 12], strides = [1, 1, 1]} : vector<18x16x12xbf16> to vector<16x16x12xbf16>
    %18 = vector.shape_cast %17 : vector<16x16x12xbf16> to vector<256x12xbf16>
    %c1 = arith.constant 1 : index
    %c0_9 = arith.constant 0 : index
    %c0_10 = arith.constant 0 : index
    %19 = vector.load %arg2[%c1, %c0_9, %c0_10] : memref<3x12x8xbf16, #tpu.memory_space<vmem>>, vector<1x12x8xbf16>
    %20 = vector.shape_cast %19 : vector<1x12x8xbf16> to vector<12x8xbf16>
    %cst_11 = arith.constant dense<0.000000e+00> : vector<256x8xf32>
    %21 = tpu.matmul %18, %20, %cst_11 {dimension_numbers = #tpu.dot_dimension_numbers<[1], [0], [0], [1], [0, 0, 1, 1], [], []>} : vector<256x12xbf16>, vector<12x8xbf16>, vector<256x8xf32> -> vector<256x8xf32>
    %22 = arith.addf %16, %21 : vector<256x8xf32>
    %23 = vector.extract_strided_slice %9 {offsets = [2, 0, 0], sizes = [16, 16, 12], strides = [1, 1, 1]} : vector<18x16x12xbf16> to vector<16x16x12xbf16>
    %24 = vector.shape_cast %23 : vector<16x16x12xbf16> to vector<256x12xbf16>
    %c2 = arith.constant 2 : index
    %c0_12 = arith.constant 0 : index
    %c0_13 = arith.constant 0 : index
    %25 = vector.load %arg2[%c2, %c0_12, %c0_13] : memref<3x12x8xbf16, #tpu.memory_space<vmem>>, vector<1x12x8xbf16>
    %26 = vector.shape_cast %25 : vector<1x12x8xbf16> to vector<12x8xbf16>
    %cst_14 = arith.constant dense<0.000000e+00> : vector<256x8xf32>
    %27 = tpu.matmul %24, %26, %cst_14 {dimension_numbers = #tpu.dot_dimension_numbers<[1], [0], [0], [1], [0, 0, 1, 1], [], []>} : vector<256x12xbf16>, vector<12x8xbf16>, vector<256x8xf32> -> vector<256x8xf32>
    %28 = arith.addf %22, %27 : vector<256x8xf32>
    %c0_15 = arith.constant 0 : index
    %c0_16 = arith.constant 0 : index
    %29 = vector.load %arg3[%c0_15, %c0_16] : memref<1x8xf32, #tpu.memory_space<vmem>>, vector<1x8xf32>
    %30 = vector.broadcast %29 : vector<1x8xf32> to vector<256x8xf32>
    %31 = arith.addf %28, %30 : vector<256x8xf32>
    %cst_17 = arith.constant 0.000000e+00 : f32
    %32 = vector.broadcast %cst_17 : f32 to vector<256x8xf32>
    %33 = arith.cmpf ogt, %31, %32 : vector<256x8xf32>
    %cst_18 = arith.constant 1.000000e-01 : f32
    %34 = vector.broadcast %cst_18 : f32 to vector<256x8xf32>
    %35 = arith.mulf %34, %31 : vector<256x8xf32>
    %36 = arith.select %33, %31, %35 : vector<256x8xi1>, vector<256x8xf32>
    %37 = arith.truncf %36 : vector<256x8xf32> to vector<256x8xbf16>
    %c0_19 = arith.constant 0 : index
    %c0_20 = arith.constant 0 : index
    %38 = vector.load %arg4[%c0_19, %c0_20] : memref<8x128xbf16, #tpu.memory_space<vmem>>, vector<8x128xbf16>
    %cst_21 = arith.constant dense<0.000000e+00> : vector<256x128xf32>
    %39 = tpu.matmul %37, %38, %cst_21 {dimension_numbers = #tpu.dot_dimension_numbers<[1], [0], [0], [1], [0, 0, 1, 1], [], []>} : vector<256x8xbf16>, vector<8x128xbf16>, vector<256x128xf32> -> vector<256x128xf32>
    %c0_22 = arith.constant 0 : index
    %c0_23 = arith.constant 0 : index
    %40 = vector.load %arg5[%c0_22, %c0_23] : memref<1x128xf32, #tpu.memory_space<vmem>>, vector<1x128xf32>
    %41 = vector.broadcast %40 : vector<1x128xf32> to vector<256x128xf32>
    %42 = arith.addf %39, %41 : vector<256x128xf32>
    %c0_24 = arith.constant 0 : index
    %c0_25 = arith.constant 0 : index
    %c0_26 = arith.constant 0 : index
    %43 = vector.load %arg6[%c0_24, %c0_25, %c0_26] : memref<1x256x128xf32, #tpu.memory_space<vmem>>, vector<1x256x128xf32>
    %44 = vector.shape_cast %43 : vector<1x256x128xf32> to vector<256x128xf32>
    %45 = vector.shape_cast %42 : vector<256x128xf32> to vector<1x256x128xf32>
    tpu.vector_store %arg6[%c0_24, %c0_25, %c0_26], %45 {strides = array<i32>} : memref<1x256x128xf32, #tpu.memory_space<vmem>>, vector<1x256x128xf32>,
    return
  }
  func.func @transform_0(%arg0: i32) -> (i32, i32, i32, i32) {
    %c0_i32 = arith.constant 0 : i32
    %c0_i32_0 = arith.constant 0 : i32
    %c0_i32_1 = arith.constant 0 : i32
    %c0_i32_2 = arith.constant 0 : i32
    return %arg0, %c0_i32, %c0_i32_0, %c0_i32_1 : i32, i32, i32, i32
  }
  func.func @transform_1(%arg0: i32) -> (i32, i32, i32) {
    %c0_i32 = arith.constant 0 : i32
    %c0_i32_0 = arith.constant 0 : i32
    %c0_i32_1 = arith.constant 0 : i32
    %c0_i32_2 = arith.constant 0 : i32
    return %c0_i32, %c0_i32_0, %c0_i32_1 : i32, i32, i32
  }
  func.func @transform_2(%arg0: i32) -> (i32, i32) {
    %c0_i32 = arith.constant 0 : i32
    %c0_i32_0 = arith.constant 0 : i32
    %c0_i32_1 = arith.constant 0 : i32
    return %c0_i32, %c0_i32_0 : i32, i32
  }
  func.func @transform_3(%arg0: i32) -> (i32, i32) {
    %c0_i32 = arith.constant 0 : i32
    %c0_i32_0 = arith.constant 0 : i32
    %c0_i32_1 = arith.constant 0 : i32
    return %c0_i32, %c0_i32_0 : i32, i32
  }
  func.func @transform_4(%arg0: i32) -> (i32, i32) {
    %c0_i32 = arith.constant 0 : i32
    %c0_i32_0 = arith.constant 0 : i32
    %c0_i32_1 = arith.constant 0 : i32
    return %c0_i32, %c0_i32_0 : i32, i32
  }
  func.func @transform_5(%arg0: i32) -> (i32, i32, i32) {
    %c0_i32 = arith.constant 0 : i32
    %c0_i32_0 = arith.constant 0 : i32
    %c0_i32_1 = arith.constant 0 : i32
    return %arg0, %c0_i32, %c0_i32_0 : i32, i32, i32
  }
}

</mosaic_0001>

<llo_original>
// kernel: tpu_custom_call.1
$region0: #{tpu_custom_call.1}
  #allocation0 [shape = 'u32[]', space=smem, size = 0x4, offset = 0x4, fixed_abs, tag = 'smem constant byte address 0x4 - core index']
  #allocation1 [shape = 'u32[144,128]{1,0:T(1,128)}', space=vmem, size = 0x12000, scoped, tag = 'internal scratch']
  %s0 = inlined_call_operand.vmem [shape: bf16[2,16,16,4], index: 0, kind: input, shape index: {}]
  %s1 = inlined_call_operand.vmem [shape: bf16[3,12,8], index: 1, kind: input, shape index: {}]
  %s2 = inlined_call_operand.vmem [shape: f32[1,8], index: 2, kind: input, shape index: {}]
  %s3 = inlined_call_operand.vmem [shape: bf16[8,128], index: 3, kind: input, shape index: {}]
  %s4 = inlined_call_operand.vmem [shape: f32[1,128], index: 4, kind: input, shape index: {}]
  %s5 = inlined_call_operand.hbm [shape: f32[2,256,128], index: 5, kind: output, shape index: {}]
  %s6 = sld [smem:[#allocation0]]
  $region53: #{tpu_custom_call.1} parent=0
    _
  %s8 = ssub.s32 1, %s6
  %s9 = scalar_select 0, %s8, %s6
  $region1: #{tpu_custom_call.1} parent=0
    #allocation2 [shape = 'u8[262144]{0}', space=vmem, size = 0x40000, scoped, tag = 'output window, operand 0']
    #allocation3 [shape = 's32[2]{0}', space=sflag, size = 0x8, scoped, tag = 'scoped memory for tpu_custom_call.1']
    %10 = vsyncpa [#allocation3], 0
    %s11 = scalar_lea.sflag [#allocation3], 1
    %12 = vsyncpa %s11, 0
    loop: start=0, step=1, limit=4
    $region2: #{tpu_custom_call.1} parent=1 // loop_pre_header
      _
    $region3: #{tpu_custom_call.1} parent=1 // loop_header
      %s14 = sphi 0, %s18
      %p15 = scmp.ge.s32.totalorder %s14, 4
      %s24 = sphi 0, %s26
      %s27 = sphi 0, %s24
      %s28 = sphi 0, %s27
      %s44 = sphi 0, %s28
      %s48 = sphi 0, %s48
      %s50 = sphi 0, %s48
      %s51 = sphi 0, %s50
      %s65 = sphi 0, %s51
      %s69 = sphi 0, %s69
      %s71 = sphi 0, %s69
      %s72 = sphi 0, %s71
      %s86 = sphi 0, %s72
      %s90 = sphi 0, %s90
      %s92 = sphi 0, %s90
      %s93 = sphi 0, %s92
      %s107 = sphi 0, %s93
      %s111 = sphi 0, %s111
      %s113 = sphi 0, %s111
      %s114 = sphi 0, %s113
      %s128 = sphi 0, %s114
      %s134 = sphi 0, %s136
      %s137 = sphi 0, %s134
      %s138 = sphi 0, %s137
      %s154 = sphi 0, %s138
    $region4: #{tpu_custom_call.1} parent=1 // loop_header_branch
      %17 = sbr.rel (%p15) target = $region8
    $region5: #{tpu_custom_call.1} parent=1 // loop_body
      %s19 = ssub.s32 %s14, 1
      %s20 = ssub.s32 %s14, 2
      %s21 = sadd.s32 %s14, 1
      %s22 = ssub.s32 %s14, %s21
      %p23 = scmp.eq.s32.totalorder %s22, 0
      %s25 = sadd.s32 %s24, 1
      %s26 = scalar_select %p23, %s24, %s25
      %p29 = pneg %p23
      %p30 = scmp.eq.s32.totalorder %s14, 1
      %p31 = por %p29, %p30
      %p32 = scmp.ne.s32.totalorder %s24, %s27
      %p33 = scmp.eq.s32.totalorder %s14, 0
      %p34 = por %p32, %p33
      %p35 = scmp.ne.s32.totalorder %s24, %s27
      %p36 = scmp.eq.s32.totalorder %s19, 1
      %p37 = por %p35, %p36
      %p38 = scmp.ne.s32.totalorder %s27, %s28
      %p39 = scmp.eq.s32.totalorder %s19, 0
      %p40 = por %p38, %p39
      %p41 = scmp.ne.s32.totalorder %s27, %s28
      %p42 = scmp.eq.s32.totalorder %s20, 1
      %p43 = por %p41, %p42
      %p45 = scmp.ne.s32.totalorder %s28, %s44
      %p46 = scmp.eq.s32.totalorder %s20, 0
      %p47 = por %p45, %p46
      %s49 = sadd.s32 %s48, 1
      %p52 = scmp.eq.s32.totalorder %s14, 1
      %p53 = scmp.ne.s32.totalorder %s48, %s50
      %p54 = scmp.eq.s32.totalorder %s14, 0
      %p55 = por %p53, %p54
      %p56 = scmp.ne.s32.totalorder %s48, %s50
      %p57 = scmp.eq.s32.totalorder %s19, 1
      %p58 = por %p56, %p57
      %p59 = scmp.ne.s32.totalorder %s50, %s51
      %p60 = scmp.eq.s32.totalorder %s19, 0
      %p61 = por %p59, %p60
      %p62 = scmp.ne.s32.totalorder %s50, %s51
      %p63 = scmp.eq.s32.totalorder %s20, 1
      %p64 = por %p62, %p63
      %p66 = scmp.ne.s32.totalorder %s51, %s65
      %p67 = scmp.eq.s32.totalorder %s20, 0
      %p68 = por %p66, %p67
      %s70 = sadd.s32 %s69, 1
      %p73 = scmp.eq.s32.totalorder %s14, 1
      %p74 = scmp.ne.s32.totalorder %s69, %s71
      %p75 = scmp.eq.s32.totalorder %s14, 0
      %p76 = por %p74, %p75
      %p77 = scmp.ne.s32.totalorder %s69, %s71
      %p78 = scmp.eq.s32.totalorder %s19, 1
      %p79 = por %p77, %p78
      %p80 = scmp.ne.s32.totalorder %s71, %s72
      %p81 = scmp.eq.s32.totalorder %s19, 0
      %p82 = por %p80, %p81
      %p83 = scmp.ne.s32.totalorder %s71, %s72
      %p84 = scmp.eq.s32.totalorder %s20, 1
      %p85 = por %p83, %p84
      %p87 = scmp.ne.s32.totalorder %s72, %s86
      %p88 = scmp.eq.s32.totalorder %s20, 0
      %p89 = por %p87, %p88
      %s91 = sadd.s32 %s90, 1
      %p94 = scmp.eq.s32.totalorder %s14, 1
      %p95 = scmp.ne.s32.totalorder %s90, %s92
      %p96 = scmp.eq.s32.totalorder %s14, 0
      %p97 = por %p95, %p96
      %p98 = scmp.ne.s32.totalorder %s90, %s92
      %p99 = scmp.eq.s32.totalorder %s19, 1
      %p100 = por %p98, %p99
      %p101 = scmp.ne.s32.totalorder %s92, %s93
      %p102 = scmp.eq.s32.totalorder %s19, 0
      %p103 = por %p101, %p102
      %p104 = scmp.ne.s32.totalorder %s92, %s93
      %p105 = scmp.eq.s32.totalorder %s20, 1
      %p106 = por %p104, %p105
      %p108 = scmp.ne.s32.totalorder %s93, %s107
      %p109 = scmp.eq.s32.totalorder %s20, 0
      %p110 = por %p108, %p109
      %s112 = sadd.s32 %s111, 1
      %p115 = scmp.eq.s32.totalorder %s14, 1
      %p116 = scmp.ne.s32.totalorder %s111, %s113
      %p117 = scmp.eq.s32.totalorder %s14, 0
      %p118 = por %p116, %p117
      %p119 = scmp.ne.s32.totalorder %s111, %s113
      %p120 = scmp.eq.s32.totalorder %s19, 1
      %p121 = por %p119, %p120
      %p122 = scmp.ne.s32.totalorder %s113, %s114
      %p123 = scmp.eq.s32.totalorder %s19, 0
      %p124 = por %p122, %p123
      %p125 = scmp.ne.s32.totalorder %s113, %s114
      %p126 = scmp.eq.s32.totalorder %s20, 1
      %p127 = por %p125, %p126
      %p129 = scmp.ne.s32.totalorder %s114, %s128
      %p130 = scmp.eq.s32.totalorder %s20, 0
      %p131 = por %p129, %p130
      %s132 = ssub.s32 %s14, %s21
      %p133 = scmp.eq.s32.totalorder %s132, 0
      %s135 = sadd.s32 %s134, 1
      %s136 = scalar_select %p133, %s134, %s135
      %p139 = pneg %p133
      %p140 = scmp.eq.s32.totalorder %s14, 1
      %p141 = por %p139, %p140
      %p142 = scmp.ne.s32.totalorder %s134, %s137
      %p143 = scmp.eq.s32.totalorder %s14, 0
      %p144 = por %p142, %p143
      %p145 = scmp.ne.s32.totalorder %s134, %s137
      %p146 = scmp.eq.s32.totalorder %s19, 1
      %p147 = por %p145, %p146
      %p148 = scmp.ne.s32.totalorder %s137, %s138
      %p149 = scmp.eq.s32.totalorder %s19, 0
      %p150 = por %p148, %p149
      %p151 = scmp.ne.s32.totalorder %s137, %s138
      %p152 = scmp.eq.s32.totalorder %s20, 1
      %p153 = por %p151, %p152
      %p155 = scmp.ne.s32.totalorder %s138, %s154
      %p156 = scmp.eq.s32.totalorder %s20, 0
      %p157 = por %p155, %p156
      %p158 = scmp.le.s32.totalorder 1, %s14
      %p159 = scmp.lt.s32.totalorder %s14, 3
      %p160 = pnand %p158, %p159
      %p161 = pneg %p160
      // Predicated region
      $region9: #{tpu_custom_call.1} parent=5 // pred_check
        _
      $region10: #{tpu_custom_call.1} parent=5 // pred_check_branch
        %163 = sbr.rel (%p160) target = $region12
      $region11: #{tpu_custom_call.1} parent=5 // pred_region
        %s164 = ssub.s32 %s14, 1
        // Predicated region
        $region13: #{tpu_custom_call.1} parent=11 // pred_check
          %p165 = pneg %p61
        $region14: #{tpu_custom_call.1} parent=11 // pred_check_branch
          %167 = sbr.rel (%p165) target = $region16
        $region15: #{tpu_custom_call.1} parent=11 // pred_region
          _
        $region16: #{tpu_custom_call.1} parent=11 // pred_fallthru
          _
        // Predicated region
        $region17: #{tpu_custom_call.1} parent=11 // pred_check
          %p168 = pneg %p82
        $region18: #{tpu_custom_call.1} parent=11 // pred_check_branch
          %170 = sbr.rel (%p168) target = $region20
        $region19: #{tpu_custom_call.1} parent=11 // pred_region
          _
        $region20: #{tpu_custom_call.1} parent=11 // pred_fallthru
          _
        // Predicated region
        $region21: #{tpu_custom_call.1} parent=11 // pred_check
          %p171 = pneg %p103
        $region22: #{tpu_custom_call.1} parent=11 // pred_check_branch
          %173 = sbr.rel (%p171) target = $region24
        $region23: #{tpu_custom_call.1} parent=11 // pred_region
          _
        $region24: #{tpu_custom_call.1} parent=11 // pred_fallthru
          _
        // Predicated region
        $region25: #{tpu_custom_call.1} parent=11 // pred_check
          %p174 = pneg %p124
        $region26: #{tpu_custom_call.1} parent=11 // pred_check_branch
          %176 = sbr.rel (%p174) target = $region28
        $region27: #{tpu_custom_call.1} parent=11 // pred_region
          _
        $region28: #{tpu_custom_call.1} parent=11 // pred_fallthru
          _
      $region12: #{tpu_custom_call.1} parent=5 // pred_fallthru
        _
      %p177 = scmp.lt.s32.totalorder %s14, 2
      // Predicated region
      $region29: #{tpu_custom_call.1} parent=5 // pred_check
        %p178 = pneg %p177
      $region30: #{tpu_custom_call.1} parent=5 // pred_check_branch
        %180 = sbr.rel (%p178) target = $region32
      $region31: #{tpu_custom_call.1} parent=5 // pred_region
        // Predicated region
        $region33: #{tpu_custom_call.1} parent=31 // pred_check
          %p181 = pneg %p34
        $region34: #{tpu_custom_call.1} parent=31 // pred_check_branch
          %183 = sbr.rel (%p181) target = $region36
        $region35: #{tpu_custom_call.1} parent=31 // pred_region
          %p184 = scmp.lt.s32.totalorder %s14, 1
          %s185 = scalar_select %p184, %s14, 1
          %s186 = smul.addr %s185, 32
          %s187 = smul.addr %s186, 4
          %s188 = scalar_lea.vmem %s0, %s187
        $region36: #{tpu_custom_call.1} parent=31 // pred_fallthru
          _
      $region32: #{tpu_custom_call.1} parent=5 // pred_fallthru
        _
      %p189 = scmp.le.s32.totalorder 1, %s14
      %p190 = scmp.lt.s32.totalorder %s14, 3
      %p191 = pnand %p189, %p190
      %p192 = pneg %p191
      // Predicated region
      $region37: #{tpu_custom_call.1} parent=5 // pred_check
        _
      $region38: #{tpu_custom_call.1} parent=5 // pred_check_branch
        %194 = sbr.rel (%p191) target = $region40
      $region39: #{tpu_custom_call.1} parent=5 // pred_region
        %s195 = ssub.s32 %s14, 1
        %p196 = scmp.lt.s32.totalorder %s19, 1
        %s197 = scalar_select %p196, %s19, 1
        %s198 = smul.addr %s197, 32
        %s199 = smul.addr %s198, 4
        %s200 = scalar_lea.vmem %s0, %s199
        %p201 = pneg %p40
        %p202 = pneg %p37
        %p203 = pneg %p61
        %p204 = pneg %p58
        %p205 = pneg %p82
        %p206 = pneg %p79
        %p207 = pneg %p103
        %p208 = pneg %p100
        %p209 = pneg %p124
        %p210 = pneg %p121
        %p211 = pneg %p150
        %p212 = pneg %p147
        %s213 = sand.u32 %s137, 1
        %s214 = scalar_lea.sflag [#allocation3], %s213
        %s215 = sand.u32 %s137, 1
        %s216 = smul.addr %s215, 256
        %s217 = scalar_lea.vmem [#allocation2], %s216
        %p218 = scmp.lt.s32.totalorder %s19, 1
        %s219 = scalar_select %p218, %s19, 1
        %s220 = smul.addr %s219, 32
        %s221 = smul.addr %s220, 4
        %s222 = scalar_lea.vmem %s0, %s221
        %v224 = vld [vmem:[%s222] sm:$0xf]
        %v225 = vld [vmem:[%s222 + $0x4] sm:$0xf]
        %v226 = vld [vmem:[%s222 + $0x8] sm:$0xf]
        %v227 = vld [vmem:[%s222 + $0xc] sm:$0xf]
        %v228 = vld [vmem:[%s222 + $0x10] sm:$0xf]
        %v229 = vld [vmem:[%s222 + $0x14] sm:$0xf]
        %v230 = vld [vmem:[%s222 + $0x18] sm:$0xf]
        %v231 = vld [vmem:[%s222 + $0x1c] sm:$0xf]
        %v232 = vld [vmem:[%s222 + $0x20] sm:$0xf]
        %v233 = vld [vmem:[%s222 + $0x24] sm:$0xf]
        %v234 = vld [vmem:[%s222 + $0x28] sm:$0xf]
        %v235 = vld [vmem:[%s222 + $0x2c] sm:$0xf]
        %v236 = vld [vmem:[%s222 + $0x30] sm:$0xf]
        %v237 = vld [vmem:[%s222 + $0x34] sm:$0xf]
        %v238 = vld [vmem:[%s222 + $0x38] sm:$0xf]
        %v239 = vld [vmem:[%s222 + $0x3c] sm:$0xf]
        %v240 = vld [vmem:[%s222 + $0x40] sm:$0xf]
        %v241 = vld [vmem:[%s222 + $0x44] sm:$0xf]
        %v242 = vld [vmem:[%s222 + $0x48] sm:$0xf]
        %v243 = vld [vmem:[%s222 + $0x4c] sm:$0xf]
        %v244 = vld [vmem:[%s222 + $0x50] sm:$0xf]
        %v245 = vld [vmem:[%s222 + $0x54] sm:$0xf]
        %v246 = vld [vmem:[%s222 + $0x58] sm:$0xf]
        %v247 = vld [vmem:[%s222 + $0x5c] sm:$0xf]
        %v248 = vld [vmem:[%s222 + $0x60] sm:$0xf]
        %v249 = vld [vmem:[%s222 + $0x64] sm:$0xf]
        %v250 = vld [vmem:[%s222 + $0x68] sm:$0xf]
        %v251 = vld [vmem:[%s222 + $0x6c] sm:$0xf]
        %v252 = vld [vmem:[%s222 + $0x70] sm:$0xf]
        %v253 = vld [vmem:[%s222 + $0x74] sm:$0xf]
        %v254 = vld [vmem:[%s222 + $0x78] sm:$0xf]
        %v255 = vld [vmem:[%s222 + $0x7c] sm:$0xf]
        %v288 = vunpack.c.l.b16 %v224
        %v289 = vunpack.c.l.b16 %v225
        %v290 = vunpack.c.l.b16 %v226
        %v291 = vunpack.c.l.b16 %v227
        %v292 = vunpack.c.l.b16 %v228
        %v293 = vunpack.c.l.b16 %v229
        %v294 = vunpack.c.l.b16 %v230
        %v295 = vunpack.c.l.b16 %v231
        %v296 = vunpack.c.l.b16 %v232
        %v297 = vunpack.c.l.b16 %v233
        %v298 = vunpack.c.l.b16 %v234
        %v299 = vunpack.c.l.b16 %v235
        %v300 = vunpack.c.l.b16 %v236
        %v301 = vunpack.c.l.b16 %v237
        %v302 = vunpack.c.l.b16 %v238
        %v303 = vunpack.c.l.b16 %v239
        %v304 = vunpack.c.l.b16 %v240
        %v305 = vunpack.c.l.b16 %v241
        %v306 = vunpack.c.l.b16 %v242
        %v307 = vunpack.c.l.b16 %v243
        %v308 = vunpack.c.l.b16 %v244
        %v309 = vunpack.c.l.b16 %v245
        %v310 = vunpack.c.l.b16 %v246
        %v311 = vunpack.c.l.b16 %v247
        %v312 = vunpack.c.l.b16 %v248
        %v313 = vunpack.c.l.b16 %v249
        %v314 = vunpack.c.l.b16 %v250
        %v315 = vunpack.c.l.b16 %v251
        %v316 = vunpack.c.l.b16 %v252
        %v317 = vunpack.c.l.b16 %v253
        %v318 = vunpack.c.l.b16 %v254
        %v319 = vunpack.c.l.b16 %v255
        %v320 = vpack.c.b16 %v289, %v288
        %v321 = vpack.c.b16 %v291, %v290
        %v322 = vpack.c.b16 %v293, %v292
        %v323 = vpack.c.b16 %v295, %v294
        %v324 = vpack.c.b16 %v297, %v296
        %v325 = vpack.c.b16 %v299, %v298
        %v326 = vpack.c.b16 %v301, %v300
        %v327 = vpack.c.b16 %v303, %v302
        %v328 = vpack.c.b16 %v305, %v304
        %v329 = vpack.c.b16 %v307, %v306
        %v330 = vpack.c.b16 %v309, %v308
        %v331 = vpack.c.b16 %v311, %v310
        %v332 = vpack.c.b16 %v313, %v312
        %v333 = vpack.c.b16 %v315, %v314
        %v334 = vpack.c.b16 %v317, %v316
        %v335 = vpack.c.b16 %v319, %v318
        %v337 = vshrl.u32 %v320, 16
        %v339 = vrot.slane %v337, 7
        %v340 = vshll.u32 %v320, 16
        %v342 = vor.u32 %v339, %v340
        %v344 = vshrl.u32 %v321, 16
        %v346 = vrot.slane %v344, 7
        %v347 = vshll.u32 %v321, 16
        %v349 = vor.u32 %v346, %v347
        %v351 = vshrl.u32 %v322, 16
        %v353 = vrot.slane %v351, 7
        %v354 = vshll.u32 %v322, 16
        %v356 = vor.u32 %v353, %v354
        %v358 = vshrl.u32 %v323, 16
        %v360 = vrot.slane %v358, 7
        %v361 = vshll.u32 %v323, 16
        %v363 = vor.u32 %v360, %v361
        %v365 = vshrl.u32 %v324, 16
        %v367 = vrot.slane %v365, 7
        %v368 = vshll.u32 %v324, 16
        %v370 = vor.u32 %v367, %v368
        %v372 = vshrl.u32 %v325, 16
        %v374 = vrot.slane %v372, 7
        %v375 = vshll.u32 %v325, 16
        %v377 = vor.u32 %v374, %v375
        %v379 = vshrl.u32 %v326, 16
        %v381 = vrot.slane %v379, 7
        %v382 = vshll.u32 %v326, 16
        %v384 = vor.u32 %v381, %v382
        %v386 = vshrl.u32 %v327, 16
        %v388 = vrot.slane %v386, 7
        %v389 = vshll.u32 %v327, 16
        %v391 = vor.u32 %v388, %v389
        %v393 = vshrl.u32 %v328, 16
        %v395 = vrot.slane %v393, 7
        %v396 = vshll.u32 %v328, 16
        %v398 = vor.u32 %v395, %v396
        %v400 = vshrl.u32 %v329, 16
        %v402 = vrot.slane %v400, 7
        %v403 = vshll.u32 %v329, 16
        %v405 = vor.u32 %v402, %v403
        %v407 = vshrl.u32 %v330, 16
        %v409 = vrot.slane %v407, 7
        %v410 = vshll.u32 %v330, 16
        %v412 = vor.u32 %v409, %v410
        %v414 = vshrl.u32 %v331, 16
        %v416 = vrot.slane %v414, 7
        %v417 = vshll.u32 %v331, 16
        %v419 = vor.u32 %v416, %v417
        %v421 = vshrl.u32 %v332, 16
        %v423 = vrot.slane %v421, 7
        %v424 = vshll.u32 %v332, 16
        %v426 = vor.u32 %v423, %v424
        %v428 = vshrl.u32 %v333, 16
        %v430 = vrot.slane %v428, 7
        %v431 = vshll.u32 %v333, 16
        %v433 = vor.u32 %v430, %v431
        %v435 = vshrl.u32 %v334, 16
        %v437 = vrot.slane %v435, 7
        %v438 = vshll.u32 %v334, 16
        %v440 = vor.u32 %v437, %v438
        %v442 = vshrl.u32 %v335, 16
        %v444 = vrot.slane %v442, 7
        %v445 = vshll.u32 %v335, 16
        %v447 = vor.u32 %v444, %v445
        %vm480 = vcmask 1040384
        %vm481 = vsmask.f32 256
        %vm482 = vmand %vm480, %vm481
        %v483 = vsel %vm482, 0, %v342
        %v484 = vsel %vm482, 0, %v349
        %v485 = vsel %vm482, 0, %v356
        %v486 = vsel %vm482, 0, %v363
        %v487 = vsel %vm482, 0, %v370
        %v488 = vsel %vm482, 0, %v377
        %v489 = vsel %vm482, 0, %v384
        %v490 = vsel %vm482, 0, %v391
        %v491 = vsel %vm482, 0, %v398
        %v492 = vsel %vm482, 0, %v405
        %v493 = vsel %vm482, 0, %v412
        %v494 = vsel %vm482, 0, %v419
        %v495 = vsel %vm482, 0, %v426
        %v496 = vsel %vm482, 0, %v433
        %v497 = vsel %vm482, 0, %v440
        %v498 = vsel %vm482, 0, %v447
        %v499 = vsel %vm482, %v339, 0
        %v500 = vsel %vm482, %v346, 0
        %v501 = vsel %vm482, %v353, 0
        %v502 = vsel %vm482, %v360, 0
        %v503 = vsel %vm482, %v367, 0
        %v504 = vsel %vm482, %v374, 0
        %v505 = vsel %vm482, %v381, 0
        %v506 = vsel %vm482, %v388, 0
        %v507 = vsel %vm482, %v395, 0
        %v508 = vsel %vm482, %v402, 0
        %v509 = vsel %vm482, %v409, 0
        %v510 = vsel %vm482, %v416, 0
        %v511 = vsel %vm482, %v423, 0
        %v512 = vsel %vm482, %v430, 0
        %v513 = vsel %vm482, %v437, 0
        %v514 = vsel %vm482, %v444, 0
        %vm515 = vsmask.f32 7424
        %v517 = vshrl.u32 %v483, 16
        %v519 = vshll.u32 %v483, 16
        %v521 = vrot.slane %v519, 1
        %v522 = vor.u32 %v517, %v521
        %v524 = vshll.u32 %v499, 16
        %v526 = vrot.slane %v524, 1
        %v527 = vsel %vm515, %v522, %v526
        %v529 = vshrl.u32 %v484, 16
        %v531 = vshll.u32 %v484, 16
        %v533 = vrot.slane %v531, 1
        %v534 = vor.u32 %v529, %v533
        %v536 = vshll.u32 %v500, 16
        %v538 = vrot.slane %v536, 1
        %v539 = vsel %vm515, %v534, %v538
        %v541 = vshrl.u32 %v485, 16
        %v543 = vshll.u32 %v485, 16
        %v545 = vrot.slane %v543, 1
        %v546 = vor.u32 %v541, %v545
        %v548 = vshll.u32 %v501, 16
        %v550 = vrot.slane %v548, 1
        %v551 = vsel %vm515, %v546, %v550
        %v553 = vshrl.u32 %v486, 16
        %v555 = vshll.u32 %v486, 16
        %v557 = vrot.slane %v555, 1
        %v558 = vor.u32 %v553, %v557
        %v560 = vshll.u32 %v502, 16
        %v562 = vrot.slane %v560, 1
        %v563 = vsel %vm515, %v558, %v562
        %v565 = vshrl.u32 %v487, 16
        %v567 = vshll.u32 %v487, 16
        %v569 = vrot.slane %v567, 1
        %v570 = vor.u32 %v565, %v569
        %v572 = vshll.u32 %v503, 16
        %v574 = vrot.slane %v572, 1
        %v575 = vsel %vm515, %v570, %v574
        %v577 = vshrl.u32 %v488, 16
        %v579 = vshll.u32 %v488, 16
        %v581 = vrot.slane %v579, 1
        %v582 = vor.u32 %v577, %v581
        %v584 = vshll.u32 %v504, 16
        %v586 = vrot.slane %v584, 1
        %v587 = vsel %vm515, %v582, %v586
        %v589 = vshrl.u32 %v489, 16
        %v591 = vshll.u32 %v489, 16
        %v593 = vrot.slane %v591, 1
        %v594 = vor.u32 %v589, %v593
        %v596 = vshll.u32 %v505, 16
        %v598 = vrot.slane %v596, 1
        %v599 = vsel %vm515, %v594, %v598
        %v601 = vshrl.u32 %v490, 16
        %v603 = vshll.u32 %v490, 16
        %v605 = vrot.slane %v603, 1
        %v606 = vor.u32 %v601, %v605
        %v608 = vshll.u32 %v506, 16
        %v610 = vrot.slane %v608, 1
        %v611 = vsel %vm515, %v606, %v610
        %v613 = vshrl.u32 %v491, 16
        %v615 = vshll.u32 %v491, 16
        %v617 = vrot.slane %v615, 1
        %v618 = vor.u32 %v613, %v617
        %v620 = vshll.u32 %v507, 16
        %v622 = vrot.slane %v620, 1
        %v623 = vsel %vm515, %v618, %v622
        %v625 = vshrl.u32 %v492, 16
        %v627 = vshll.u32 %v492, 16
        %v629 = vrot.slane %v627, 1
        %v630 = vor.u32 %v625, %v629
        %v632 = vshll.u32 %v508, 16
        %v634 = vrot.slane %v632, 1
        %v635 = vsel %vm515, %v630, %v634
        %v637 = vshrl.u32 %v493, 16
        %v639 = vshll.u32 %v493, 16
        %v641 = vrot.slane %v639, 1
        %v642 = vor.u32 %v637, %v641
        %v644 = vshll.u32 %v509, 16
        %v646 = vrot.slane %v644, 1
        %v647 = vsel %vm515, %v642, %v646
        %v649 = vshrl.u32 %v494, 16
        %v651 = vshll.u32 %v494, 16
        %v653 = vrot.slane %v651, 1
        %v654 = vor.u32 %v649, %v653
        %v656 = vshll.u32 %v510, 16
        %v658 = vrot.slane %v656, 1
        %v659 = vsel %vm515, %v654, %v658
        %v661 = vshrl.u32 %v495, 16
        %v663 = vshll.u32 %v495, 16
        %v665 = vrot.slane %v663, 1
        %v666 = vor.u32 %v661, %v665
        %v668 = vshll.u32 %v511, 16
        %v670 = vrot.slane %v668, 1
        %v671 = vsel %vm515, %v666, %v670
        %v673 = vshrl.u32 %v496, 16
        %v675 = vshll.u32 %v496, 16
        %v677 = vrot.slane %v675, 1
        %v678 = vor.u32 %v673, %v677
        %v680 = vshll.u32 %v512, 16
        %v682 = vrot.slane %v680, 1
        %v683 = vsel %vm515, %v678, %v682
        %v685 = vshrl.u32 %v497, 16
        %v687 = vshll.u32 %v497, 16
        %v689 = vrot.slane %v687, 1
        %v690 = vor.u32 %v685, %v689
        %v692 = vshll.u32 %v513, 16
        %v694 = vrot.slane %v692, 1
        %v695 = vsel %vm515, %v690, %v694
        %v697 = vshrl.u32 %v498, 16
        %v699 = vshll.u32 %v498, 16
        %v701 = vrot.slane %v699, 1
        %v702 = vor.u32 %v697, %v701
        %v704 = vshll.u32 %v514, 16
        %v706 = vrot.slane %v704, 1
        %v707 = vsel %vm515, %v702, %v706
        %708 = vrot.lane.b32.xlu0 %v527, 4
        %v709 = vpop.permute.xlu0 %708
        %710 = vrot.lane.b32.xlu0 %v539, 4
        %v711 = vpop.permute.xlu0 %710
        %712 = vrot.lane.b32.xlu0 %v551, 4
        %v713 = vpop.permute.xlu0 %712
        %714 = vrot.lane.b32.xlu0 %v563, 4
        %v715 = vpop.permute.xlu0 %714
        %716 = vrot.lane.b32.xlu0 %v575, 4
        %v717 = vpop.permute.xlu0 %716
        %718 = vrot.lane.b32.xlu0 %v587, 4
        %v719 = vpop.permute.xlu0 %718
        %720 = vrot.lane.b32.xlu0 %v599, 4
        %v721 = vpop.permute.xlu0 %720
        %722 = vrot.lane.b32.xlu0 %v611, 4
        %v723 = vpop.permute.xlu0 %722
        %724 = vrot.lane.b32.xlu0 %v623, 4
        %v725 = vpop.permute.xlu0 %724
        %726 = vrot.lane.b32.xlu0 %v635, 4
        %v727 = vpop.permute.xlu0 %726
        %728 = vrot.lane.b32.xlu0 %v647, 4
        %v729 = vpop.permute.xlu0 %728
        %730 = vrot.lane.b32.xlu0 %v659, 4
        %v731 = vpop.permute.xlu0 %730
        %732 = vrot.lane.b32.xlu0 %v671, 4
        %v733 = vpop.permute.xlu0 %732
        %734 = vrot.lane.b32.xlu0 %v683, 4
        %v735 = vpop.permute.xlu0 %734
        %736 = vrot.lane.b32.xlu0 %v695, 4
        %v737 = vpop.permute.xlu0 %736
        %738 = vrot.lane.b32.xlu0 %v707, 4
        %v739 = vpop.permute.xlu0 %738
        %vm772 = vcmask 1046528
        %v773 = vrot.slane %v483, 1
        %v774 = vrot.slane %v499, 1
        %v775 = vsel %vm772, %v773, %v774
        %v776 = vrot.slane %v484, 1
        %v777 = vrot.slane %v500, 1
        %v778 = vsel %vm772, %v776, %v777
        %v779 = vrot.slane %v485, 1
        %v780 = vrot.slane %v501, 1
        %v781 = vsel %vm772, %v779, %v780
        %v782 = vrot.slane %v486, 1
        %v783 = vrot.slane %v502, 1
        %v784 = vsel %vm772, %v782, %v783
        %v785 = vrot.slane %v487, 1
        %v786 = vrot.slane %v503, 1
        %v787 = vsel %vm772, %v785, %v786
        %v788 = vrot.slane %v488, 1
        %v789 = vrot.slane %v504, 1
        %v790 = vsel %vm772, %v788, %v789
        %v791 = vrot.slane %v489, 1
        %v792 = vrot.slane %v505, 1
        %v793 = vsel %vm772, %v791, %v792
        %v794 = vrot.slane %v490, 1
        %v795 = vrot.slane %v506, 1
        %v796 = vsel %vm772, %v794, %v795
        %v797 = vrot.slane %v491, 1
        %v798 = vrot.slane %v507, 1
        %v799 = vsel %vm772, %v797, %v798
        %v800 = vrot.slane %v492, 1
        %v801 = vrot.slane %v508, 1
        %v802 = vsel %vm772, %v800, %v801
        %v803 = vrot.slane %v493, 1
        %v804 = vrot.slane %v509, 1
        %v805 = vsel %vm772, %v803, %v804
        %v806 = vrot.slane %v494, 1
        %v807 = vrot.slane %v510, 1
        %v808 = vsel %vm772, %v806, %v807
        %v809 = vrot.slane %v495, 1
        %v810 = vrot.slane %v511, 1
        %v811 = vsel %vm772, %v809, %v810
        %v812 = vrot.slane %v496, 1
        %v813 = vrot.slane %v512, 1
        %v814 = vsel %vm772, %v812, %v813
        %v815 = vrot.slane %v497, 1
        %v816 = vrot.slane %v513, 1
        %v817 = vsel %vm772, %v815, %v816
        %v818 = vrot.slane %v498, 1
        %v819 = vrot.slane %v514, 1
        %v820 = vsel %vm772, %v818, %v819
        %821 = vrot.lane.b32.xlu0 %v775, 8
        %v822 = vpop.permute.xlu0 %821
        %823 = vrot.lane.b32.xlu0 %v778, 8
        %v824 = vpop.permute.xlu0 %823
        %825 = vrot.lane.b32.xlu0 %v781, 8
        %v826 = vpop.permute.xlu0 %825
        %827 = vrot.lane.b32.xlu0 %v784, 8
        %v828 = vpop.permute.xlu0 %827
        %829 = vrot.lane.b32.xlu0 %v787, 8
        %v830 = vpop.permute.xlu0 %829
        %831 = vrot.lane.b32.xlu0 %v790, 8
        %v832 = vpop.permute.xlu0 %831
        %833 = vrot.lane.b32.xlu0 %v793, 8
        %v834 = vpop.permute.xlu0 %833
        %835 = vrot.lane.b32.xlu0 %v796, 8
        %v836 = vpop.permute.xlu0 %835
        %837 = vrot.lane.b32.xlu0 %v799, 8
        %v838 = vpop.permute.xlu0 %837
        %839 = vrot.lane.b32.xlu0 %v802, 8
        %v840 = vpop.permute.xlu0 %839
        %841 = vrot.lane.b32.xlu0 %v805, 8
        %v842 = vpop.permute.xlu0 %841
        %843 = vrot.lane.b32.xlu0 %v808, 8
        %v844 = vpop.permute.xlu0 %843
        %845 = vrot.lane.b32.xlu0 %v811, 8
        %v846 = vpop.permute.xlu0 %845
        %847 = vrot.lane.b32.xlu0 %v814, 8
        %v848 = vpop.permute.xlu0 %847
        %849 = vrot.lane.b32.xlu0 %v817, 8
        %v850 = vpop.permute.xlu0 %849
        %851 = vrot.lane.b32.xlu0 %v820, 8
        %v852 = vpop.permute.xlu0 %851
        %vm853 = vcmask 31744
        %v855 = vsel %vm853, %v483, %v709
        %v857 = vsel %vm853, %v484, %v711
        %v859 = vsel %vm853, %v485, %v713
        %v861 = vsel %vm853, %v486, %v715
        %v863 = vsel %vm853, %v487, %v717
        %v865 = vsel %vm853, %v488, %v719
        %v867 = vsel %vm853, %v489, %v721
        %v869 = vsel %vm853, %v490, %v723
        %v871 = vsel %vm853, %v491, %v725
        %v873 = vsel %vm853, %v492, %v727
        %v875 = vsel %vm853, %v493, %v729
        %v877 = vsel %vm853, %v494, %v731
        %v879 = vsel %vm853, %v495, %v733
        %v881 = vsel %vm853, %v496, %v735
        %v883 = vsel %vm853, %v497, %v737
        %v885 = vsel %vm853, %v498, %v739
        %vm886 = vcmask 64512
        %v888 = vsel %vm886, %v855, %v822
        %v890 = vsel %vm886, %v857, %v824
        %v892 = vsel %vm886, %v859, %v826
        %v894 = vsel %vm886, %v861, %v828
        %v896 = vsel %vm886, %v863, %v830
        %v898 = vsel %vm886, %v865, %v832
        %v900 = vsel %vm886, %v867, %v834
        %v902 = vsel %vm886, %v869, %v836
        %v904 = vsel %vm886, %v871, %v838
        %v906 = vsel %vm886, %v873, %v840
        %v908 = vsel %vm886, %v875, %v842
        %v910 = vsel %vm886, %v877, %v844
        %v912 = vsel %vm886, %v879, %v846
        %v914 = vsel %vm886, %v881, %v848
        %v916 = vsel %vm886, %v883, %v850
        %v918 = vsel %vm886, %v885, %v852
        %v919 = vld [vmem:[%s1] sm:$0xf]
        %v920 = vld [vmem:[%s1 + $0x4] sm:$0x3]
        %s921 = scalar_lea.vmem %s1, 8
        %v922 = vld [vmem:[%s921] sm:$0xf]
        %v923 = vld [vmem:[%s921 + $0x4] sm:$0x3]
        %v926 = vunpack.c.l.b16 %v922
        %v927 = vunpack.c.l.b16 %v923
        %v928 = vpack.c.b16 %v927, %v926
        %vm929 = vcmask 97280
        %v930 = vsel %vm929, %v888, 0
        %v932 = vsel %vm929, %v890, 0
        %v934 = vsel %vm929, %v892, 0
        %v936 = vsel %vm929, %v894, 0
        %v938 = vsel %vm929, %v896, 0
        %v940 = vsel %vm929, %v898, 0
        %v942 = vsel %vm929, %v900, 0
        %v944 = vsel %vm929, %v902, 0
        %v946 = vsel %vm929, %v904, 0
        %v948 = vsel %vm929, %v906, 0
        %v950 = vsel %vm929, %v908, 0
        %v952 = vsel %vm929, %v910, 0
        %v954 = vsel %vm929, %v912, 0
        %v956 = vsel %vm929, %v914, 0
        %v958 = vsel %vm929, %v916, 0
        %v960 = vsel %vm929, %v918, 0
        %vm962 = vcmask 1045504
        %v964 = vsel %vm962, %v928, 0
        %966 = vmatprep.subr.bf16.mxu0 0
        %967 = vmatpush1.bf16.msra.mxu0 %v964
        %968 = vmatprep.subr.bf16.mxu0 0
        %969 = vmatpush1.bf16.msra.mxu0 0
        %970 = vmatprep.subr.bf16.mxu0 0
        %971 = vmatpush1.bf16.msra.mxu0 0
        %972 = vmatprep.subr.bf16.mxu0 0
        %973 = vmatpush1.bf16.msra.mxu0 0
        %974 = vmatprep.subr.bf16.mxu0 0
        %975 = vmatpush1.bf16.msra.mxu0 0
        %976 = vmatprep.subr.bf16.mxu0 0
        %977 = vmatpush1.bf16.msra.mxu0 0
        %978 = vmatprep.subr.bf16.mxu0 0
        %979 = vmatpush1.bf16.msra.mxu0 0
        %980 = vmatprep.subr.bf16.mxu0 0
        %981 = vmatpush1.bf16.msra.mxu0 0
        %982 = vmatprep.subr.bf16.mxu0 0
        %983 = vmatpush1.bf16.msra.mxu0 0
        %984 = vmatprep.subr.bf16.mxu0 0
        %985 = vmatpush1.bf16.msra.mxu0 0
        %986 = vmatprep.subr.bf16.mxu0 0
        %987 = vmatpush1.bf16.msra.mxu0 0
        %988 = vmatprep.subr.bf16.mxu0 0
        %989 = vmatpush1.bf16.msra.mxu0 0
        %990 = vmatprep.subr.bf16.mxu0 0
        %991 = vmatpush1.bf16.msra.mxu0 0
        %992 = vmatprep.subr.bf16.mxu0 0
        %993 = vmatpush1.bf16.msra.mxu0 0
        %994 = vmatprep.subr.bf16.mxu0 0
        %995 = vmatpush1.bf16.msra.mxu0 0
        %996 = vmatprep.subr.bf16.mxu0 0
        %997 = vmatpush1.bf16.msra.mxu0 0
        %998 = vmatprep.mubr.bf16.mxu0 0
        %999 = vmatmul.mubr.bf16.gmra.mrb[0].mxu0 %v930
        %v1000 = vpop.f32.mrb[0].mxu0
        %v1001 = vadd.f32 0.0, %v1000
        %v1002 = vpop.f32.mrb[0].mxu0
        %v1003 = vpop.f32.mrb[0].mxu0
        %v1004 = vadd.f32 0.0, %v1003
        %v1005 = vpop.f32.mrb[0].mxu0
        %1006 = vmatprep.mubr.bf16.mxu0 0
        %1007 = vmatmul.mubr.bf16.gmra.mrb[0].mxu0 %v932
        %v1008 = vpop.f32.mrb[0].mxu0
        %v1009 = vadd.f32 0.0, %v1008
        %v1010 = vpop.f32.mrb[0].mxu0
        %v1011 = vpop.f32.mrb[0].mxu0
        %v1012 = vadd.f32 0.0, %v1011
        %v1013 = vpop.f32.mrb[0].mxu0
        %1014 = vmatprep.mubr.bf16.mxu0 0
        %1015 = vmatmul.mubr.bf16.gmra.mrb[0].mxu0 %v934
        %v1016 = vpop.f32.mrb[0].mxu0
        %v1017 = vadd.f32 0.0, %v1016
        %v1018 = vpop.f32.mrb[0].mxu0
        %v1019 = vpop.f32.mrb[0].mxu0
        %v1020 = vadd.f32 0.0, %v1019
        %v1021 = vpop.f32.mrb[0].mxu0
        %1022 = vmatprep.mubr.bf16.mxu0 0
        %1023 = vmatmul.mubr.bf16.gmra.mrb[0].mxu0 %v936
        %v1024 = vpop.f32.mrb[0].mxu0
        %v1025 = vadd.f32 0.0, %v1024
        %v1026 = vpop.f32.mrb[0].mxu0
        %v1027 = vpop.f32.mrb[0].mxu0
        %v1028 = vadd.f32 0.0, %v1027
        %v1029 = vpop.f32.mrb[0].mxu0
        %1030 = vmatprep.mubr.bf16.mxu0 0
        %1031 = vmatmul.mubr.bf16.gmra.mrb[0].mxu0 %v938
        %v1032 = vpop.f32.mrb[0].mxu0
        %v1033 = vadd.f32 0.0, %v1032
        %v1034 = vpop.f32.mrb[0].mxu0
        %v1035 = vpop.f32.mrb[0].mxu0
        %v1036 = vadd.f32 0.0, %v1035
        %v1037 = vpop.f32.mrb[0].mxu0
        %1038 = vmatprep.mubr.bf16.mxu0 0
        %1039 = vmatmul.mubr.bf16.gmra.mrb[0].mxu0 %v940
        %v1040 = vpop.f32.mrb[0].mxu0
        %v1041 = vadd.f32 0.0, %v1040
        %v1042 = vpop.f32.mrb[0].mxu0
        %v1043 = vpop.f32.mrb[0].mxu0
        %v1044 = vadd.f32 0.0, %v1043
        %v1045 = vpop.f32.mrb[0].mxu0
        %1046 = vmatprep.mubr.bf16.mxu0 0
        %1047 = vmatmul.mubr.bf16.gmra.mrb[0].mxu0 %v942
        %v1048 = vpop.f32.mrb[0].mxu0
        %v1049 = vadd.f32 0.0, %v1048
        %v1050 = vpop.f32.mrb[0].mxu0
        %v1051 = vpop.f32.mrb[0].mxu0
        %v1052 = vadd.f32 0.0, %v1051
        %v1053 = vpop.f32.mrb[0].mxu0
        %1054 = vmatprep.mubr.bf16.mxu0 0
        %1055 = vmatmul.mubr.bf16.gmra.mrb[0].mxu0 %v944
        %v1056 = vpop.f32.mrb[0].mxu0
        %v1057 = vadd.f32 0.0, %v1056
        %v1058 = vpop.f32.mrb[0].mxu0
        %v1059 = vpop.f32.mrb[0].mxu0
        %v1060 = vadd.f32 0.0, %v1059
        %v1061 = vpop.f32.mrb[0].mxu0
        %1062 = vmatprep.mubr.bf16.mxu0 0
        %1063 = vmatmul.mubr.bf16.gmra.mrb[0].mxu0 %v946
        %v1064 = vpop.f32.mrb[0].mxu0
        %v1065 = vadd.f32 0.0, %v1064
        %v1066 = vpop.f32.mrb[0].mxu0
        %v1067 = vpop.f32.mrb[0].mxu0
        %v1068 = vadd.f32 0.0, %v1067
        %v1069 = vpop.f32.mrb[0].mxu0
        %1070 = vmatprep.mubr.bf16.mxu0 0
        %1071 = vmatmul.mubr.bf16.gmra.mrb[0].mxu0 %v948
        %v1072 = vpop.f32.mrb[0].mxu0
        %v1073 = vadd.f32 0.0, %v1072
        %v1074 = vpop.f32.mrb[0].mxu0
        %v1075 = vpop.f32.mrb[0].mxu0
        %v1076 = vadd.f32 0.0, %v1075
        %v1077 = vpop.f32.mrb[0].mxu0
        %1078 = vmatprep.mubr.bf16.mxu0 0
        %1079 = vmatmul.mubr.bf16.gmra.mrb[0].mxu0 %v950
        %v1080 = vpop.f32.mrb[0].mxu0
        %v1081 = vadd.f32 0.0, %v1080
        %v1082 = vpop.f32.mrb[0].mxu0
        %v1083 = vpop.f32.mrb[0].mxu0
        %v1084 = vadd.f32 0.0, %v1083
        %v1085 = vpop.f32.mrb[0].mxu0
        %1086 = vmatprep.mubr.bf16.mxu0 0
        %1087 = vmatmul.mubr.bf16.gmra.mrb[0].mxu0 %v952
        %v1088 = vpop.f32.mrb[0].mxu0
        %v1089 = vadd.f32 0.0, %v1088
        %v1090 = vpop.f32.mrb[0].mxu0
        %v1091 = vpop.f32.mrb[0].mxu0
        %v1092 = vadd.f32 0.0, %v1091
        %v1093 = vpop.f32.mrb[0].mxu0
        %1094 = vmatprep.mubr.bf16.mxu0 0
        %1095 = vmatmul.mubr.bf16.gmra.mrb[0].mxu0 %v954
        %v1096 = vpop.f32.mrb[0].mxu0
        %v1097 = vadd.f32 0.0, %v1096
        %v1098 = vpop.f32.mrb[0].mxu0
        %v1099 = vpop.f32.mrb[0].mxu0
        %v1100 = vadd.f32 0.0, %v1099
        %v1101 = vpop.f32.mrb[0].mxu0
        %1102 = vmatprep.mubr.bf16.mxu0 0
        %1103 = vmatmul.mubr.bf16.gmra.mrb[0].mxu0 %v956
        %v1104 = vpop.f32.mrb[0].mxu0
        %v1105 = vadd.f32 0.0, %v1104
        %v1106 = vpop.f32.mrb[0].mxu0
        %v1107 = vpop.f32.mrb[0].mxu0
        %v1108 = vadd.f32 0.0, %v1107
        %v1109 = vpop.f32.mrb[0].mxu0
        %1110 = vmatprep.mubr.bf16.mxu0 0
        %1111 = vmatmul.mubr.bf16.gmra.mrb[0].mxu0 %v958
        %v1112 = vpop.f32.mrb[0].mxu0
        %v1113 = vadd.f32 0.0, %v1112
        %v1114 = vpop.f32.mrb[0].mxu0
        %v1115 = vpop.f32.mrb[0].mxu0
        %v1116 = vadd.f32 0.0, %v1115
        %v1117 = vpop.f32.mrb[0].mxu0
        %1118 = vmatprep.mubr.bf16.mxu0 0
        %1119 = vmatmul.mubr.bf16.gmra.mrb[0].mxu0 %v960
        %v1120 = vpop.f32.mrb[0].mxu0
        %v1121 = vadd.f32 0.0, %v1120
        %v1122 = vpop.f32.mrb[0].mxu0
        %v1123 = vpop.f32.mrb[0].mxu0
        %v1124 = vadd.f32 0.0, %v1123
        %v1125 = vpop.f32.mrb[0].mxu0
        %1126 = vdwg.mxu0
        %v1129 = vunpack.c.l.b16 %v919
        %v1130 = vunpack.c.l.b16 %v920
        %v1131 = vpack.c.b16 %v1130, %v1129
        %v1133 = vsel %vm929, 0, 0
        %v1136 = vsel %vm962, %v1131, 0
        %1138 = vmatprep.subr.bf16.mxu0 0
        %1139 = vmatpush1.bf16.msra.mxu0 %v1136
        %1140 = vmatprep.subr.bf16.mxu0 0
        %1141 = vmatpush1.bf16.msra.mxu0 0
        %1142 = vmatprep.subr.bf16.mxu0 0
        %1143 = vmatpush1.bf16.msra.mxu0 0
        %1144 = vmatprep.subr.bf16.mxu0 0
        %1145 = vmatpush1.bf16.msra.mxu0 0
        %1146 = vmatprep.subr.bf16.mxu0 0
        %1147 = vmatpush1.bf16.msra.mxu0 0
        %1148 = vmatprep.subr.bf16.mxu0 0
        %1149 = vmatpush1.bf16.msra.mxu0 0
        %1150 = vmatprep.subr.bf16.mxu0 0
        %1151 = vmatpush1.bf16.msra.mxu0 0
        %1152 = vmatprep.subr.bf16.mxu0 0
        %1153 = vmatpush1.bf16.msra.mxu0 0
        %1154 = vmatprep.subr.bf16.mxu0 0
        %1155 = vmatpush1.bf16.msra.mxu0 0
        %1156 = vmatprep.subr.bf16.mxu0 0
        %1157 = vmatpush1.bf16.msra.mxu0 0
        %1158 = vmatprep.subr.bf16.mxu0 0
        %1159 = vmatpush1.bf16.msra.mxu0 0
        %1160 = vmatprep.subr.bf16.mxu0 0
        %1161 = vmatpush1.bf16.msra.mxu0 0
        %1162 = vmatprep.subr.bf16.mxu0 0
        %1163 = vmatpush1.bf16.msra.mxu0 0
        %1164 = vmatprep.subr.bf16.mxu0 0
        %1165 = vmatpush1.bf16.msra.mxu0 0
        %1166 = vmatprep.subr.bf16.mxu0 0
        %1167 = vmatpush1.bf16.msra.mxu0 0
        %1168 = vmatprep.subr.bf16.mxu0 0
        %1169 = vmatpush1.bf16.msra.mxu0 0
        %1170 = vmatprep.mubr.bf16.mxu0 0
        %1171 = vmatmul.mubr.bf16.gmra.mrb[0].mxu0 %v1133
        %v1172 = vpop.f32.mrb[0].mxu0
        %v1173 = vadd.f32 %v1001, %v1172
        %v1174 = vpop.f32.mrb[0].mxu0
        %v1175 = vpop.f32.mrb[0].mxu0
        %v1176 = vadd.f32 %v1004, %v1175
        %v1177 = vpop.f32.mrb[0].mxu0
        %1178 = vmatprep.mubr.bf16.mxu0 0
        %1179 = vmatmul.mubr.bf16.gmra.mrb[0].mxu0 %v930
        %v1180 = vpop.f32.mrb[0].mxu0
        %v1181 = vadd.f32 %v1009, %v1180
        %v1182 = vpop.f32.mrb[0].mxu0
        %v1183 = vpop.f32.mrb[0].mxu0
        %v1184 = vadd.f32 %v1012, %v1183
        %v1185 = vpop.f32.mrb[0].mxu0
        %1186 = vmatprep.mubr.bf16.mxu0 0
        %1187 = vmatmul.mubr.bf16.gmra.mrb[0].mxu0 %v932
        %v1188 = vpop.f32.mrb[0].mxu0
        %v1189 = vadd.f32 %v1017, %v1188
        %v1190 = vpop.f32.mrb[0].mxu0
        %v1191 = vpop.f32.mrb[0].mxu0
        %v1192 = vadd.f32 %v1020, %v1191
        %v1193 = vpop.f32.mrb[0].mxu0
        %1194 = vmatprep.mubr.bf16.mxu0 0
        %1195 = vmatmul.mubr.bf16.gmra.mrb[0].mxu0 %v934
        %v1196 = vpop.f32.mrb[0].mxu0
        %v1197 = vadd.f32 %v1025, %v1196
        %v1198 = vpop.f32.mrb[0].mxu0
        %v1199 = vpop.f32.mrb[0].mxu0
        %v1200 = vadd.f32 %v1028, %v1199
        %v1201 = vpop.f32.mrb[0].mxu0
        %1202 = vmatprep.mubr.bf16.mxu0 0
        %1203 = vmatmul.mubr.bf16.gmra.mrb[0].mxu0 %v936
        %v1204 = vpop.f32.mrb[0].mxu0
        %v1205 = vadd.f32 %v1033, %v1204
        %v1206 = vpop.f32.mrb[0].mxu0
        %v1207 = vpop.f32.mrb[0].mxu0
        %v1208 = vadd.f32 %v1036, %v1207
        %v1209 = vpop.f32.mrb[0].mxu0
        %1210 = vmatprep.mubr.bf16.mxu0 0
        %1211 = vmatmul.mubr.bf16.gmra.mrb[0].mxu0 %v938
        %v1212 = vpop.f32.mrb[0].mxu0
        %v1213 = vadd.f32 %v1041, %v1212
        %v1214 = vpop.f32.mrb[0].mxu0
        %v1215 = vpop.f32.mrb[0].mxu0
        %v1216 = vadd.f32 %v1044, %v1215
        %v1217 = vpop.f32.mrb[0].mxu0
        %1218 = vmatprep.mubr.bf16.mxu0 0
        %1219 = vmatmul.mubr.bf16.gmra.mrb[0].mxu0 %v940
        %v1220 = vpop.f32.mrb[0].mxu0
        %v1221 = vadd.f32 %v1049, %v1220
        %v1222 = vpop.f32.mrb[0].mxu0
        %v1223 = vpop.f32.mrb[0].mxu0
        %v1224 = vadd.f32 %v1052, %v1223
        %v1225 = vpop.f32.mrb[0].mxu0
        %1226 = vmatprep.mubr.bf16.mxu0 0
        %1227 = vmatmul.mubr.bf16.gmra.mrb[0].mxu0 %v942
        %v1228 = vpop.f32.mrb[0].mxu0
        %v1229 = vadd.f32 %v1057, %v1228
        %v1230 = vpop.f32.mrb[0].mxu0
        %v1231 = vpop.f32.mrb[0].mxu0
        %v1232 = vadd.f32 %v1060, %v1231
        %v1233 = vpop.f32.mrb[0].mxu0
        %1234 = vmatprep.mubr.bf16.mxu0 0
        %1235 = vmatmul.mubr.bf16.gmra.mrb[0].mxu0 %v944
        %v1236 = vpop.f32.mrb[0].mxu0
        %v1237 = vadd.f32 %v1065, %v1236
        %v1238 = vpop.f32.mrb[0].mxu0
        %v1239 = vpop.f32.mrb[0].mxu0
        %v1240 = vadd.f32 %v1068, %v1239
        %v1241 = vpop.f32.mrb[0].mxu0
        %1242 = vmatprep.mubr.bf16.mxu0 0
        %1243 = vmatmul.mubr.bf16.gmra.mrb[0].mxu0 %v946
        %v1244 = vpop.f32.mrb[0].mxu0
        %v1245 = vadd.f32 %v1073, %v1244
        %v1246 = vpop.f32.mrb[0].mxu0
        %v1247 = vpop.f32.mrb[0].mxu0
        %v1248 = vadd.f32 %v1076, %v1247
        %v1249 = vpop.f32.mrb[0].mxu0
        %1250 = vmatprep.mubr.bf16.mxu0 0
        %1251 = vmatmul.mubr.bf16.gmra.mrb[0].mxu0 %v948
        %v1252 = vpop.f32.mrb[0].mxu0
        %v1253 = vadd.f32 %v1081, %v1252
        %v1254 = vpop.f32.mrb[0].mxu0
        %v1255 = vpop.f32.mrb[0].mxu0
        %v1256 = vadd.f32 %v1084, %v1255
        %v1257 = vpop.f32.mrb[0].mxu0
        %1258 = vmatprep.mubr.bf16.mxu0 0
        %1259 = vmatmul.mubr.bf16.gmra.mrb[0].mxu0 %v950
        %v1260 = vpop.f32.mrb[0].mxu0
        %v1261 = vadd.f32 %v1089, %v1260
        %v1262 = vpop.f32.mrb[0].mxu0
        %v1263 = vpop.f32.mrb[0].mxu0
        %v1264 = vadd.f32 %v1092, %v1263
        %v1265 = vpop.f32.mrb[0].mxu0
        %1266 = vmatprep.mubr.bf16.mxu0 0
        %1267 = vmatmul.mubr.bf16.gmra.mrb[0].mxu0 %v952
        %v1268 = vpop.f32.mrb[0].mxu0
        %v1269 = vadd.f32 %v1097, %v1268
        %v1270 = vpop.f32.mrb[0].mxu0
        %v1271 = vpop.f32.mrb[0].mxu0
        %v1272 = vadd.f32 %v1100, %v1271
        %v1273 = vpop.f32.mrb[0].mxu0
        %1274 = vmatprep.mubr.bf16.mxu0 0
        %1275 = vmatmul.mubr.bf16.gmra.mrb[0].mxu0 %v954
        %v1276 = vpop.f32.mrb[0].mxu0
        %v1277 = vadd.f32 %v1105, %v1276
        %v1278 = vpop.f32.mrb[0].mxu0
        %v1279 = vpop.f32.mrb[0].mxu0
        %v1280 = vadd.f32 %v1108, %v1279
        %v1281 = vpop.f32.mrb[0].mxu0
        %1282 = vmatprep.mubr.bf16.mxu0 0
        %1283 = vmatmul.mubr.bf16.gmra.mrb[0].mxu0 %v956
        %v1284 = vpop.f32.mrb[0].mxu0
        %v1285 = vadd.f32 %v1113, %v1284
        %v1286 = vpop.f32.mrb[0].mxu0
        %v1287 = vpop.f32.mrb[0].mxu0
        %v1288 = vadd.f32 %v1116, %v1287
        %v1289 = vpop.f32.mrb[0].mxu0
        %1290 = vmatprep.mubr.bf16.mxu0 0
        %1291 = vmatmul.mubr.bf16.gmra.mrb[0].mxu0 %v958
        %v1292 = vpop.f32.mrb[0].mxu0
        %v1293 = vadd.f32 %v1121, %v1292
        %v1294 = vpop.f32.mrb[0].mxu0
        %v1295 = vpop.f32.mrb[0].mxu0
        %v1296 = vadd.f32 %v1124, %v1295
        %v1297 = vpop.f32.mrb[0].mxu0
        %1298 = vdwg.mxu0
        %s1299 = scalar_lea.vmem %s1, 16
        %v1300 = vld [vmem:[%s1299] sm:$0xf]
        %v1301 = vld [vmem:[%s1299 + $0x4] sm:$0x3]
        %v1304 = vunpack.c.l.b16 %v1300
        %v1305 = vunpack.c.l.b16 %v1301
        %v1306 = vpack.c.b16 %v1305, %v1304
        %v1308 = vsel %vm962, %v1306, 0
        %1310 = vmatprep.subr.bf16.mxu0 0
        %1311 = vmatpush1.bf16.msra.mxu0 %v1308
        %1312 = vmatprep.subr.bf16.mxu0 0
        %1313 = vmatpush1.bf16.msra.mxu0 0
        %1314 = vmatprep.subr.bf16.mxu0 0
        %1315 = vmatpush1.bf16.msra.mxu0 0
        %1316 = vmatprep.subr.bf16.mxu0 0
        %1317 = vmatpush1.bf16.msra.mxu0 0
        %1318 = vmatprep.subr.bf16.mxu0 0
        %1319 = vmatpush1.bf16.msra.mxu0 0
        %1320 = vmatprep.subr.bf16.mxu0 0
        %1321 = vmatpush1.bf16.msra.mxu0 0
        %1322 = vmatprep.subr.bf16.mxu0 0
        %1323 = vmatpush1.bf16.msra.mxu0 0
        %1324 = vmatprep.subr.bf16.mxu0 0
        %1325 = vmatpush1.bf16.msra.mxu0 0
        %1326 = vmatprep.subr.bf16.mxu0 0
        %1327 = vmatpush1.bf16.msra.mxu0 0
        %1328 = vmatprep.subr.bf16.mxu0 0
        %1329 = vmatpush1.bf16.msra.mxu0 0
        %1330 = vmatprep.subr.bf16.mxu0 0
        %1331 = vmatpush1.bf16.msra.mxu0 0
        %1332 = vmatprep.subr.bf16.mxu0 0
        %1333 = vmatpush1.bf16.msra.mxu0 0
        %1334 = vmatprep.subr.bf16.mxu0 0
        %1335 = vmatpush1.bf16.msra.mxu0 0
        %1336 = vmatprep.subr.bf16.mxu0 0
        %1337 = vmatpush1.bf16.msra.mxu0 0
        %1338 = vmatprep.subr.bf16.mxu0 0
        %1339 = vmatpush1.bf16.msra.mxu0 0
        %1340 = vmatprep.subr.bf16.mxu0 0
        %1341 = vmatpush1.bf16.msra.mxu0 0
        %1342 = vmatprep.mubr.bf16.mxu0 0
        %1343 = vmatmul.mubr.bf16.gmra.mrb[0].mxu0 %v932
        %v1344 = vpop.f32.mrb[0].mxu0
        %v1345 = vadd.f32 0.0, %v1344
        %v1346 = vpop.f32.mrb[0].mxu0
        %v1347 = vpop.f32.mrb[0].mxu0
        %v1348 = vadd.f32 0.0, %v1347
        %v1349 = vpop.f32.mrb[0].mxu0
        %1350 = vmatprep.mubr.bf16.mxu0 0
        %1351 = vmatmul.mubr.bf16.gmra.mrb[0].mxu0 %v934
        %v1352 = vpop.f32.mrb[0].mxu0
        %v1353 = vadd.f32 0.0, %v1352
        %v1354 = vpop.f32.mrb[0].mxu0
        %v1355 = vpop.f32.mrb[0].mxu0
        %v1356 = vadd.f32 0.0, %v1355
        %v1357 = vpop.f32.mrb[0].mxu0
        %1358 = vmatprep.mubr.bf16.mxu0 0
        %1359 = vmatmul.mubr.bf16.gmra.mrb[0].mxu0 %v936
        %v1360 = vpop.f32.mrb[0].mxu0
        %v1361 = vadd.f32 0.0, %v1360
        %v1362 = vpop.f32.mrb[0].mxu0
        %v1363 = vpop.f32.mrb[0].mxu0
        %v1364 = vadd.f32 0.0, %v1363
        %v1365 = vpop.f32.mrb[0].mxu0
        %1366 = vmatprep.mubr.bf16.mxu0 0
        %1367 = vmatmul.mubr.bf16.gmra.mrb[0].mxu0 %v938
        %v1368 = vpop.f32.mrb[0].mxu0
        %v1369 = vadd.f32 0.0, %v1368
        %v1370 = vpop.f32.mrb[0].mxu0
        %v1371 = vpop.f32.mrb[0].mxu0
        %v1372 = vadd.f32 0.0, %v1371
        %v1373 = vpop.f32.mrb[0].mxu0
        %1374 = vmatprep.mubr.bf16.mxu0 0
        %1375 = vmatmul.mubr.bf16.gmra.mrb[0].mxu0 %v940
        %v1376 = vpop.f32.mrb[0].mxu0
        %v1377 = vadd.f32 0.0, %v1376
        %v1378 = vpop.f32.mrb[0].mxu0
        %v1379 = vpop.f32.mrb[0].mxu0
        %v1380 = vadd.f32 0.0, %v1379
        %v1381 = vpop.f32.mrb[0].mxu0
        %1382 = vmatprep.mubr.bf16.mxu0 0
        %1383 = vmatmul.mubr.bf16.gmra.mrb[0].mxu0 %v942
        %v1384 = vpop.f32.mrb[0].mxu0
        %v1385 = vadd.f32 0.0, %v1384
        %v1386 = vpop.f32.mrb[0].mxu0
        %v1387 = vpop.f32.mrb[0].mxu0
        %v1388 = vadd.f32 0.0, %v1387
        %v1389 = vpop.f32.mrb[0].mxu0
        %1390 = vmatprep.mubr.bf16.mxu0 0
        %1391 = vmatmul.mubr.bf16.gmra.mrb[0].mxu0 %v944
        %v1392 = vpop.f32.mrb[0].mxu0
        %v1393 = vadd.f32 0.0, %v1392
        %v1394 = vpop.f32.mrb[0].mxu0
        %v1395 = vpop.f32.mrb[0].mxu0
        %v1396 = vadd.f32 0.0, %v1395
        %v1397 = vpop.f32.mrb[0].mxu0
        %1398 = vmatprep.mubr.bf16.mxu0 0
        %1399 = vmatmul.mubr.bf16.gmra.mrb[0].mxu0 %v946
        %v1400 = vpop.f32.mrb[0].mxu0
        %v1401 = vadd.f32 0.0, %v1400
        %v1402 = vpop.f32.mrb[0].mxu0
        %v1403 = vpop.f32.mrb[0].mxu0
        %v1404 = vadd.f32 0.0, %v1403
        %v1405 = vpop.f32.mrb[0].mxu0
        %1406 = vmatprep.mubr.bf16.mxu0 0
        %1407 = vmatmul.mubr.bf16.gmra.mrb[0].mxu0 %v948
        %v1408 = vpop.f32.mrb[0].mxu0
        %v1409 = vadd.f32 0.0, %v1408
        %v1410 = vpop.f32.mrb[0].mxu0
        %v1411 = vpop.f32.mrb[0].mxu0
        %v1412 = vadd.f32 0.0, %v1411
        %v1413 = vpop.f32.mrb[0].mxu0
        %1414 = vmatprep.mubr.bf16.mxu0 0
        %1415 = vmatmul.mubr.bf16.gmra.mrb[0].mxu0 %v950
        %v1416 = vpop.f32.mrb[0].mxu0
        %v1417 = vadd.f32 0.0, %v1416
        %v1418 = vpop.f32.mrb[0].mxu0
        %v1419 = vpop.f32.mrb[0].mxu0
        %v1420 = vadd.f32 0.0, %v1419
        %v1421 = vpop.f32.mrb[0].mxu0
        %1422 = vmatprep.mubr.bf16.mxu0 0
        %1423 = vmatmul.mubr.bf16.gmra.mrb[0].mxu0 %v952
        %v1424 = vpop.f32.mrb[0].mxu0
        %v1425 = vadd.f32 0.0, %v1424
        %v1426 = vpop.f32.mrb[0].mxu0
        %v1427 = vpop.f32.mrb[0].mxu0
        %v1428 = vadd.f32 0.0, %v1427
        %v1429 = vpop.f32.mrb[0].mxu0
        %1430 = vmatprep.mubr.bf16.mxu0 0
        %1431 = vmatmul.mubr.bf16.gmra.mrb[0].mxu0 %v954
        %v1432 = vpop.f32.mrb[0].mxu0
        %v1433 = vadd.f32 0.0, %v1432
        %v1434 = vpop.f32.mrb[0].mxu0
        %v1435 = vpop.f32.mrb[0].mxu0
        %v1436 = vadd.f32 0.0, %v1435
        %v1437 = vpop.f32.mrb[0].mxu0
        %1438 = vmatprep.mubr.bf16.mxu0 0
        %1439 = vmatmul.mubr.bf16.gmra.mrb[0].mxu0 %v956
        %v1440 = vpop.f32.mrb[0].mxu0
        %v1441 = vadd.f32 0.0, %v1440
        %v1442 = vpop.f32.mrb[0].mxu0
        %v1443 = vpop.f32.mrb[0].mxu0
        %v1444 = vadd.f32 0.0, %v1443
        %v1445 = vpop.f32.mrb[0].mxu0
        %1446 = vmatprep.mubr.bf16.mxu0 0
        %1447 = vmatmul.mubr.bf16.gmra.mrb[0].mxu0 %v958
        %v1448 = vpop.f32.mrb[0].mxu0
        %v1449 = vadd.f32 0.0, %v1448
        %v1450 = vpop.f32.mrb[0].mxu0
        %v1451 = vpop.f32.mrb[0].mxu0
        %v1452 = vadd.f32 0.0, %v1451
        %v1453 = vpop.f32.mrb[0].mxu0
        %1454 = vmatprep.mubr.bf16.mxu0 0
        %1455 = vmatmul.mubr.bf16.gmra.mrb[0].mxu0 %v960
        %v1456 = vpop.f32.mrb[0].mxu0
        %v1457 = vadd.f32 0.0, %v1456
        %v1458 = vpop.f32.mrb[0].mxu0
        %v1459 = vpop.f32.mrb[0].mxu0
        %v1460 = vadd.f32 0.0, %v1459
        %v1461 = vpop.f32.mrb[0].mxu0
        %1462 = vmatprep.mubr.bf16.mxu0 0
        %1463 = vmatmul.mubr.bf16.gmra.mrb[0].mxu0 %v1133
        %v1464 = vpop.f32.mrb[0].mxu0
        %v1465 = vadd.f32 0.0, %v1464
        %v1466 = vpop.f32.mrb[0].mxu0
        %v1467 = vpop.f32.mrb[0].mxu0
        %v1468 = vadd.f32 0.0, %v1467
        %v1469 = vpop.f32.mrb[0].mxu0
        %1470 = vdwg.mxu0
        %v1471 = vadd.f32 %v1173, %v1345
        %v1472 = vadd.f32 %v1176, %v1348
        %v1473 = vadd.f32 %v1181, %v1353
        %v1474 = vadd.f32 %v1184, %v1356
        %v1475 = vadd.f32 %v1189, %v1361
        %v1476 = vadd.f32 %v1192, %v1364
        %v1477 = vadd.f32 %v1197, %v1369
        %v1478 = vadd.f32 %v1200, %v1372
        %v1479 = vadd.f32 %v1205, %v1377
        %v1480 = vadd.f32 %v1208, %v1380
        %v1481 = vadd.f32 %v1213, %v1385
        %v1482 = vadd.f32 %v1216, %v1388
        %v1483 = vadd.f32 %v1221, %v1393
        %v1484 = vadd.f32 %v1224, %v1396
        %v1485 = vadd.f32 %v1229, %v1401
        %v1486 = vadd.f32 %v1232, %v1404
        %v1487 = vadd.f32 %v1237, %v1409
        %v1488 = vadd.f32 %v1240, %v1412
        %v1489 = vadd.f32 %v1245, %v1417
        %v1490 = vadd.f32 %v1248, %v1420
        %v1491 = vadd.f32 %v1253, %v1425
        %v1492 = vadd.f32 %v1256, %v1428
        %v1493 = vadd.f32 %v1261, %v1433
        %v1494 = vadd.f32 %v1264, %v1436
        %v1495 = vadd.f32 %v1269, %v1441
        %v1496 = vadd.f32 %v1272, %v1444
        %v1497 = vadd.f32 %v1277, %v1449
        %v1498 = vadd.f32 %v1280, %v1452
        %v1499 = vadd.f32 %v1285, %v1457
        %v1500 = vadd.f32 %v1288, %v1460
        %v1501 = vadd.f32 %v1293, %v1465
        %v1502 = vadd.f32 %v1296, %v1468
        %v1503 = vld [vmem:[%s2] sm:$0x1]
        %v1505 = vlaneseq
        %v1506 = vshrl.u32 %v1505, 7
        %v1507 = vsub.s32 0, %v1506
        %v1508 = vrot.slane %v1503, %v1507
        %v1510 = vadd.f32 %v1471, %v1508
        %v1511 = vadd.f32 %v1472, %v1508
        %v1512 = vadd.f32 %v1473, %v1508
        %v1513 = vadd.f32 %v1474, %v1508
        %v1514 = vadd.f32 %v1475, %v1508
        %v1515 = vadd.f32 %v1476, %v1508
        %v1516 = vadd.f32 %v1477, %v1508
        %v1517 = vadd.f32 %v1478, %v1508
        %v1518 = vadd.f32 %v1479, %v1508
        %v1519 = vadd.f32 %v1480, %v1508
        %v1520 = vadd.f32 %v1481, %v1508
        %v1521 = vadd.f32 %v1482, %v1508
        %v1522 = vadd.f32 %v1483, %v1508
        %v1523 = vadd.f32 %v1484, %v1508
        %v1524 = vadd.f32 %v1485, %v1508
        %v1525 = vadd.f32 %v1486, %v1508
        %v1526 = vadd.f32 %v1487, %v1508
        %v1527 = vadd.f32 %v1488, %v1508
        %v1528 = vadd.f32 %v1489, %v1508
        %v1529 = vadd.f32 %v1490, %v1508
        %v1530 = vadd.f32 %v1491, %v1508
        %v1531 = vadd.f32 %v1492, %v1508
        %v1532 = vadd.f32 %v1493, %v1508
        %v1533 = vadd.f32 %v1494, %v1508
        %v1534 = vadd.f32 %v1495, %v1508
        %v1535 = vadd.f32 %v1496, %v1508
        %v1536 = vadd.f32 %v1497, %v1508
        %v1537 = vadd.f32 %v1498, %v1508
        %v1538 = vadd.f32 %v1499, %v1508
        %v1539 = vadd.f32 %v1500, %v1508
        %v1540 = vadd.f32 %v1501, %v1508
        %v1541 = vadd.f32 %v1502, %v1508
        %vm1542 = vcmp.gt.f32.partialorder %v1510, 0.0
        %vm1543 = vcmp.gt.f32.partialorder %v1511, 0.0
        %vm1544 = vcmp.gt.f32.partialorder %v1512, 0.0
        %vm1545 = vcmp.gt.f32.partialorder %v1513, 0.0
        %vm1546 = vcmp.gt.f32.partialorder %v1514, 0.0
        %vm1547 = vcmp.gt.f32.partialorder %v1515, 0.0
        %vm1548 = vcmp.gt.f32.partialorder %v1516, 0.0
        %vm1549 = vcmp.gt.f32.partialorder %v1517, 0.0
        %vm1550 = vcmp.gt.f32.partialorder %v1518, 0.0
        %vm1551 = vcmp.gt.f32.partialorder %v1519, 0.0
        %vm1552 = vcmp.gt.f32.partialorder %v1520, 0.0
        %vm1553 = vcmp.gt.f32.partialorder %v1521, 0.0
        %vm1554 = vcmp.gt.f32.partialorder %v1522, 0.0
        %vm1555 = vcmp.gt.f32.partialorder %v1523, 0.0
        %vm1556 = vcmp.gt.f32.partialorder %v1524, 0.0
        %vm1557 = vcmp.gt.f32.partialorder %v1525, 0.0
        %vm1558 = vcmp.gt.f32.partialorder %v1526, 0.0
        %vm1559 = vcmp.gt.f32.partialorder %v1527, 0.0
        %vm1560 = vcmp.gt.f32.partialorder %v1528, 0.0
        %vm1561 = vcmp.gt.f32.partialorder %v1529, 0.0
        %vm1562 = vcmp.gt.f32.partialorder %v1530, 0.0
        %vm1563 = vcmp.gt.f32.partialorder %v1531, 0.0
        %vm1564 = vcmp.gt.f32.partialorder %v1532, 0.0
        %vm1565 = vcmp.gt.f32.partialorder %v1533, 0.0
        %vm1566 = vcmp.gt.f32.partialorder %v1534, 0.0
        %vm1567 = vcmp.gt.f32.partialorder %v1535, 0.0
        %vm1568 = vcmp.gt.f32.partialorder %v1536, 0.0
        %vm1569 = vcmp.gt.f32.partialorder %v1537, 0.0
        %vm1570 = vcmp.gt.f32.partialorder %v1538, 0.0
        %vm1571 = vcmp.gt.f32.partialorder %v1539, 0.0
        %vm1572 = vcmp.gt.f32.partialorder %v1540, 0.0
        %vm1573 = vcmp.gt.f32.partialorder %v1541, 0.0
        %v1574 = vmul.f32 %v1510, 0.1
        %v1575 = vmul.f32 %v1511, 0.1
        %v1576 = vmul.f32 %v1512, 0.1
        %v1577 = vmul.f32 %v1513, 0.1
        %v1578 = vmul.f32 %v1514, 0.1
        %v1579 = vmul.f32 %v1515, 0.1
        %v1580 = vmul.f32 %v1516, 0.1
        %v1581 = vmul.f32 %v1517, 0.1
        %v1582 = vmul.f32 %v1518, 0.1
        %v1583 = vmul.f32 %v1519, 0.1
        %v1584 = vmul.f32 %v1520, 0.1
        %v1585 = vmul.f32 %v1521, 0.1
        %v1586 = vmul.f32 %v1522, 0.1
        %v1587 = vmul.f32 %v1523, 0.1
        %v1588 = vmul.f32 %v1524, 0.1
        %v1589 = vmul.f32 %v1525, 0.1
        %v1590 = vmul.f32 %v1526, 0.1
        %v1591 = vmul.f32 %v1527, 0.1
        %v1592 = vmul.f32 %v1528, 0.1
        %v1593 = vmul.f32 %v1529, 0.1
        %v1594 = vmul.f32 %v1530, 0.1
        %v1595 = vmul.f32 %v1531, 0.1
        %v1596 = vmul.f32 %v1532, 0.1
        %v1597 = vmul.f32 %v1533, 0.1
        %v1598 = vmul.f32 %v1534, 0.1
        %v1599 = vmul.f32 %v1535, 0.1
        %v1600 = vmul.f32 %v1536, 0.1
        %v1601 = vmul.f32 %v1537, 0.1
        %v1602 = vmul.f32 %v1538, 0.1
        %v1603 = vmul.f32 %v1539, 0.1
        %v1604 = vmul.f32 %v1540, 0.1
        %v1605 = vmul.f32 %v1541, 0.1
        %v1606 = vsel %vm1542, %v1510, %v1574
        %v1607 = vsel %vm1543, %v1511, %v1575
        %v1608 = vsel %vm1544, %v1512, %v1576
        %v1609 = vsel %vm1545, %v1513, %v1577
        %v1610 = vsel %vm1546, %v1514, %v1578
        %v1611 = vsel %vm1547, %v1515, %v1579
        %v1612 = vsel %vm1548, %v1516, %v1580
        %v1613 = vsel %vm1549, %v1517, %v1581
        %v1614 = vsel %vm1550, %v1518, %v1582
        %v1615 = vsel %vm1551, %v1519, %v1583
        %v1616 = vsel %vm1552, %v1520, %v1584
        %v1617 = vsel %vm1553, %v1521, %v1585
        %v1618 = vsel %vm1554, %v1522, %v1586
        %v1619 = vsel %vm1555, %v1523, %v1587
        %v1620 = vsel %vm1556, %v1524, %v1588
        %v1621 = vsel %vm1557, %v1525, %v1589
        %v1622 = vsel %vm1558, %v1526, %v1590
        %v1623 = vsel %vm1559, %v1527, %v1591
        %v1624 = vsel %vm1560, %v1528, %v1592
        %v1625 = vsel %vm1561, %v1529, %v1593
        %v1626 = vsel %vm1562, %v1530, %v1594
        %v1627 = vsel %vm1563, %v1531, %v1595
        %v1628 = vsel %vm1564, %v1532, %v1596
        %v1629 = vsel %vm1565, %v1533, %v1597
        %v1630 = vsel %vm1566, %v1534, %v1598
        %v1631 = vsel %vm1567, %v1535, %v1599
        %v1632 = vsel %vm1568, %v1536, %v1600
        %v1633 = vsel %vm1569, %v1537, %v1601
        %v1634 = vsel %vm1570, %v1538, %v1602
        %v1635 = vsel %vm1571, %v1539, %v1603
        %v1636 = vsel %vm1572, %v1540, %v1604
        %v1637 = vsel %vm1573, %v1541, %v1605
        %v1638 = vpack.c.bf16 %v1607, %v1606
        %v1639 = vpack.c.bf16 %v1609, %v1608
        %v1640 = vpack.c.bf16 %v1611, %v1610
        %v1641 = vpack.c.bf16 %v1613, %v1612
        %v1642 = vpack.c.bf16 %v1615, %v1614
        %v1643 = vpack.c.bf16 %v1617, %v1616
        %v1644 = vpack.c.bf16 %v1619, %v1618
        %v1645 = vpack.c.bf16 %v1621, %v1620
        %v1646 = vpack.c.bf16 %v1623, %v1622
        %v1647 = vpack.c.bf16 %v1625, %v1624
        %v1648 = vpack.c.bf16 %v1627, %v1626
        %v1649 = vpack.c.bf16 %v1629, %v1628
        %v1650 = vpack.c.bf16 %v1631, %v1630
        %v1651 = vpack.c.bf16 %v1633, %v1632
        %v1652 = vpack.c.bf16 %v1635, %v1634
        %v1653 = vpack.c.bf16 %v1637, %v1636
        %v1654 = vld [vmem:[%s3] sm:$0xf]
        %v1655 = vld [vmem:[%s4] sm:$0x1]
        %v1657 = vlaneseq
        %v1658 = vshrl.u32 %v1657, 7
        %v1659 = vsub.s32 0, %v1658
        %v1660 = vrot.slane %v1655, %v1659
        %v1663 = vsel %vm886, %v1638, 0
        %v1666 = vsel %vm886, %v1639, 0
        %v1669 = vsel %vm886, %v1640, 0
        %v1672 = vsel %vm886, %v1641, 0
        %v1675 = vsel %vm886, %v1642, 0
        %v1678 = vsel %vm886, %v1643, 0
        %v1681 = vsel %vm886, %v1644, 0
        %v1684 = vsel %vm886, %v1645, 0
        %v1687 = vsel %vm886, %v1646, 0
        %v1690 = vsel %vm886, %v1647, 0
        %v1693 = vsel %vm886, %v1648, 0
        %v1696 = vsel %vm886, %v1649, 0
        %v1699 = vsel %vm886, %v1650, 0
        %v1702 = vsel %vm886, %v1651, 0
        %v1705 = vsel %vm886, %v1652, 0
        %v1708 = vsel %vm886, %v1653, 0
        %vm1710 = vcmask 1043456
        %v1712 = vsel %vm1710, %v1654, 0
        %1714 = vmatprep.subr.bf16.mxu0 0
        %1715 = vmatpush1.bf16.msra.mxu0 %v1712
        %1716 = vmatprep.subr.bf16.mxu0 0
        %1717 = vmatpush1.bf16.msra.mxu0 0
        %1718 = vmatprep.subr.bf16.mxu0 0
        %1719 = vmatpush1.bf16.msra.mxu0 0
        %1720 = vmatprep.subr.bf16.mxu0 0
        %1721 = vmatpush1.bf16.msra.mxu0 0
        %1722 = vmatprep.subr.bf16.mxu0 0
        %1723 = vmatpush1.bf16.msra.mxu0 0
        %1724 = vmatprep.subr.bf16.mxu0 0
        %1725 = vmatpush1.bf16.msra.mxu0 0
        %1726 = vmatprep.subr.bf16.mxu0 0
        %1727 = vmatpush1.bf16.msra.mxu0 0
        %1728 = vmatprep.subr.bf16.mxu0 0
        %1729 = vmatpush1.bf16.msra.mxu0 0
        %1730 = vmatprep.subr.bf16.mxu0 0
        %1731 = vmatpush1.bf16.msra.mxu0 0
        %1732 = vmatprep.subr.bf16.mxu0 0
        %1733 = vmatpush1.bf16.msra.mxu0 0
        %1734 = vmatprep.subr.bf16.mxu0 0
        %1735 = vmatpush1.bf16.msra.mxu0 0
        %1736 = vmatprep.subr.bf16.mxu0 0
        %1737 = vmatpush1.bf16.msra.mxu0 0
        %1738 = vmatprep.subr.bf16.mxu0 0
        %1739 = vmatpush1.bf16.msra.mxu0 0
        %1740 = vmatprep.subr.bf16.mxu0 0
        %1741 = vmatpush1.bf16.msra.mxu0 0
        %1742 = vmatprep.subr.bf16.mxu0 0
        %1743 = vmatpush1.bf16.msra.mxu0 0
        %1744 = vmatprep.subr.bf16.mxu0 0
        %1745 = vmatpush1.bf16.msra.mxu0 0
        %1746 = vmatprep.mubr.bf16.mxu0 0
        %1747 = vmatmul.mubr.bf16.gmra.mrb[0].mxu0 %v1663
        %v1748 = vpop.f32.mrb[0].mxu0
        %v1749 = vadd.f32 %v1660, %v1748
        %v1750 = vpop.f32.mrb[0].mxu0
        %v1751 = vpop.f32.mrb[0].mxu0
        %v1752 = vadd.f32 %v1660, %v1751
        %v1753 = vpop.f32.mrb[0].mxu0
        %1754 = vmatprep.mubr.bf16.mxu0 0
        %1755 = vmatmul.mubr.bf16.gmra.mrb[0].mxu0 %v1666
        %v1756 = vpop.f32.mrb[0].mxu0
        %v1757 = vadd.f32 %v1660, %v1756
        %v1758 = vpop.f32.mrb[0].mxu0
        %v1759 = vpop.f32.mrb[0].mxu0
        %v1760 = vadd.f32 %v1660, %v1759
        %v1761 = vpop.f32.mrb[0].mxu0
        %1762 = vmatprep.mubr.bf16.mxu0 0
        %1763 = vmatmul.mubr.bf16.gmra.mrb[0].mxu0 %v1669
        %v1764 = vpop.f32.mrb[0].mxu0
        %v1765 = vadd.f32 %v1660, %v1764
        %v1766 = vpop.f32.mrb[0].mxu0
        %v1767 = vpop.f32.mrb[0].mxu0
        %v1768 = vadd.f32 %v1660, %v1767
        %v1769 = vpop.f32.mrb[0].mxu0
        %1770 = vmatprep.mubr.bf16.mxu0 0
        %1771 = vmatmul.mubr.bf16.gmra.mrb[0].mxu0 %v1672
        %v1772 = vpop.f32.mrb[0].mxu0
        %v1773 = vadd.f32 %v1660, %v1772
        %v1774 = vpop.f32.mrb[0].mxu0
        %v1775 = vpop.f32.mrb[0].mxu0
        %v1776 = vadd.f32 %v1660, %v1775
        %v1777 = vpop.f32.mrb[0].mxu0
        %1778 = vmatprep.mubr.bf16.mxu0 0
        %1779 = vmatmul.mubr.bf16.gmra.mrb[0].mxu0 %v1675
        %v1780 = vpop.f32.mrb[0].mxu0
        %v1781 = vadd.f32 %v1660, %v1780
        %v1782 = vpop.f32.mrb[0].mxu0
        %v1783 = vpop.f32.mrb[0].mxu0
        %v1784 = vadd.f32 %v1660, %v1783
        %v1785 = vpop.f32.mrb[0].mxu0
        %1786 = vmatprep.mubr.bf16.mxu0 0
        %1787 = vmatmul.mubr.bf16.gmra.mrb[0].mxu0 %v1678
        %v1788 = vpop.f32.mrb[0].mxu0
        %v1789 = vadd.f32 %v1660, %v1788
        %v1790 = vpop.f32.mrb[0].mxu0
        %v1791 = vpop.f32.mrb[0].mxu0
        %v1792 = vadd.f32 %v1660, %v1791
        %v1793 = vpop.f32.mrb[0].mxu0
        %1794 = vmatprep.mubr.bf16.mxu0 0
        %1795 = vmatmul.mubr.bf16.gmra.mrb[0].mxu0 %v1681
        %v1796 = vpop.f32.mrb[0].mxu0
        %v1797 = vadd.f32 %v1660, %v1796
        %v1798 = vpop.f32.mrb[0].mxu0
        %v1799 = vpop.f32.mrb[0].mxu0
        %v1800 = vadd.f32 %v1660, %v1799
        %v1801 = vpop.f32.mrb[0].mxu0
        %1802 = vmatprep.mubr.bf16.mxu0 0
        %1803 = vmatmul.mubr.bf16.gmra.mrb[0].mxu0 %v1684
        %v1804 = vpop.f32.mrb[0].mxu0
        %v1805 = vadd.f32 %v1660, %v1804
        %v1806 = vpop.f32.mrb[0].mxu0
        %v1807 = vpop.f32.mrb[0].mxu0
        %v1808 = vadd.f32 %v1660, %v1807
        %v1809 = vpop.f32.mrb[0].mxu0
        %1810 = vmatprep.mubr.bf16.mxu0 0
        %1811 = vmatmul.mubr.bf16.gmra.mrb[0].mxu0 %v1687
        %v1812 = vpop.f32.mrb[0].mxu0
        %v1813 = vadd.f32 %v1660, %v1812
        %v1814 = vpop.f32.mrb[0].mxu0
        %v1815 = vpop.f32.mrb[0].mxu0
        %v1816 = vadd.f32 %v1660, %v1815
        %v1817 = vpop.f32.mrb[0].mxu0
        %1818 = vmatprep.mubr.bf16.mxu0 0
        %1819 = vmatmul.mubr.bf16.gmra.mrb[0].mxu0 %v1690
        %v1820 = vpop.f32.mrb[0].mxu0
        %v1821 = vadd.f32 %v1660, %v1820
        %v1822 = vpop.f32.mrb[0].mxu0
        %v1823 = vpop.f32.mrb[0].mxu0
        %v1824 = vadd.f32 %v1660, %v1823
        %v1825 = vpop.f32.mrb[0].mxu0
        %1826 = vmatprep.mubr.bf16.mxu0 0
        %1827 = vmatmul.mubr.bf16.gmra.mrb[0].mxu0 %v1693
        %v1828 = vpop.f32.mrb[0].mxu0
        %v1829 = vadd.f32 %v1660, %v1828
        %v1830 = vpop.f32.mrb[0].mxu0
        %v1831 = vpop.f32.mrb[0].mxu0
        %v1832 = vadd.f32 %v1660, %v1831
        %v1833 = vpop.f32.mrb[0].mxu0
        %1834 = vmatprep.mubr.bf16.mxu0 0
        %1835 = vmatmul.mubr.bf16.gmra.mrb[0].mxu0 %v1696
        %v1836 = vpop.f32.mrb[0].mxu0
        %v1837 = vadd.f32 %v1660, %v1836
        %v1838 = vpop.f32.mrb[0].mxu0
        %v1839 = vpop.f32.mrb[0].mxu0
        %v1840 = vadd.f32 %v1660, %v1839
        %v1841 = vpop.f32.mrb[0].mxu0
        %1842 = vmatprep.mubr.bf16.mxu0 0
        %1843 = vmatmul.mubr.bf16.gmra.mrb[0].mxu0 %v1699
        %v1844 = vpop.f32.mrb[0].mxu0
        %v1845 = vadd.f32 %v1660, %v1844
        %v1846 = vpop.f32.mrb[0].mxu0
        %v1847 = vpop.f32.mrb[0].mxu0
        %v1848 = vadd.f32 %v1660, %v1847
        %v1849 = vpop.f32.mrb[0].mxu0
        %1850 = vmatprep.mubr.bf16.mxu0 0
        %1851 = vmatmul.mubr.bf16.gmra.mrb[0].mxu0 %v1702
        %v1852 = vpop.f32.mrb[0].mxu0
        %v1853 = vadd.f32 %v1660, %v1852
        %v1854 = vpop.f32.mrb[0].mxu0
        %v1855 = vpop.f32.mrb[0].mxu0
        %v1856 = vadd.f32 %v1660, %v1855
        %v1857 = vpop.f32.mrb[0].mxu0
        %1858 = vmatprep.mubr.bf16.mxu0 0
        %1859 = vmatmul.mubr.bf16.gmra.mrb[0].mxu0 %v1705
        %v1860 = vpop.f32.mrb[0].mxu0
        %v1861 = vadd.f32 %v1660, %v1860
        %v1862 = vpop.f32.mrb[0].mxu0
        %v1863 = vpop.f32.mrb[0].mxu0
        %v1864 = vadd.f32 %v1660, %v1863
        %v1865 = vpop.f32.mrb[0].mxu0
        %1866 = vmatprep.mubr.bf16.mxu0 0
        %1867 = vmatmul.mubr.bf16.gmra.mrb[0].mxu0 %v1708
        %v1868 = vpop.f32.mrb[0].mxu0
        %v1869 = vadd.f32 %v1660, %v1868
        %v1870 = vpop.f32.mrb[0].mxu0
        %v1871 = vpop.f32.mrb[0].mxu0
        %v1872 = vadd.f32 %v1660, %v1871
        %v1873 = vpop.f32.mrb[0].mxu0
        %1874 = vdwg.mxu0
        %1875 = vst [vmem:[%s217] sm:$0xff] %v1749
        %1876 = vst [vmem:[%s217 + $0x8] sm:$0xff] %v1752
        %1877 = vst [vmem:[%s217 + $0x10] sm:$0xff] %v1757
        %1878 = vst [vmem:[%s217 + $0x18] sm:$0xff] %v1760
        %1879 = vst [vmem:[%s217 + $0x20] sm:$0xff] %v1765
        %1880 = vst [vmem:[%s217 + $0x28] sm:$0xff] %v1768
        %1881 = vst [vmem:[%s217 + $0x30] sm:$0xff] %v1773
        %1882 = vst [vmem:[%s217 + $0x38] sm:$0xff] %v1776
        %1883 = vst [vmem:[%s217 + $0x40] sm:$0xff] %v1781
        %1884 = vst [vmem:[%s217 + $0x48] sm:$0xff] %v1784
        %1885 = vst [vmem:[%s217 + $0x50] sm:$0xff] %v1789
        %1886 = vst [vmem:[%s217 + $0x58] sm:$0xff] %v1792
        %1887 = vst [vmem:[%s217 + $0x60] sm:$0xff] %v1797
        %1888 = vst [vmem:[%s217 + $0x68] sm:$0xff] %v1800
        %1889 = vst [vmem:[%s217 + $0x70] sm:$0xff] %v1805
        %1890 = vst [vmem:[%s217 + $0x78] sm:$0xff] %v1808
        %1891 = vst [vmem:[%s217 + $0x80] sm:$0xff] %v1813
        %1892 = vst [vmem:[%s217 + $0x88] sm:$0xff] %v1816
        %1893 = vst [vmem:[%s217 + $0x90] sm:$0xff] %v1821
        %1894 = vst [vmem:[%s217 + $0x98] sm:$0xff] %v1824
        %1895 = vst [vmem:[%s217 + $0xa0] sm:$0xff] %v1829
        %1896 = vst [vmem:[%s217 + $0xa8] sm:$0xff] %v1832
        %1897 = vst [vmem:[%s217 + $0xb0] sm:$0xff] %v1837
        %1898 = vst [vmem:[%s217 + $0xb8] sm:$0xff] %v1840
        %1899 = vst [vmem:[%s217 + $0xc0] sm:$0xff] %v1845
        %1900 = vst [vmem:[%s217 + $0xc8] sm:$0xff] %v1848
        %1901 = vst [vmem:[%s217 + $0xd0] sm:$0xff] %v1853
        %1902 = vst [vmem:[%s217 + $0xd8] sm:$0xff] %v1856
        %1903 = vst [vmem:[%s217 + $0xe0] sm:$0xff] %v1861
        %1904 = vst [vmem:[%s217 + $0xe8] sm:$0xff] %v1864
        %1905 = vst [vmem:[%s217 + $0xf0] sm:$0xff] %v1869
        %1906 = vst [vmem:[%s217 + $0xf8] sm:$0xff] %v1872
        %s1907 = sand.u32 %s137, 1
        %s1908 = scalar_lea.sflag [#allocation3], %s1907
        %s1909 = sand.u32 %s137, 1
        %s1910 = smul.addr %s1909, 256
        %s1911 = scalar_lea.vmem [#allocation2], %s1910
        // Predicated region
        $region41: #{tpu_custom_call.1} parent=39 // pred_check
          %p1912 = pneg %p147
        $region42: #{tpu_custom_call.1} parent=39 // pred_check_branch
          %1914 = sbr.rel (%p1912) target = $region44
        $region43: #{tpu_custom_call.1} parent=39 // pred_region
          %s1916 = ssub.s32 4096, 4096
          %1917 = vsyncadd %s1908, %s1916
          %s1918 = smul.addr %s19, 32
          %s1919 = smul.addr %s1918, 128
          %s1920 = scalar_lea.hbm %s5, %s1919
          %s1921 = sshll.u32 %s1911, 4
          %s1922 = int_to_ptr.vmem [resolvable:$true] %s1921
          %1927 = dma.vmem_to_hbm [thread:$0]  %s1922, 4096, %s1920, %s1908, 128, 128, 8
        $region44: #{tpu_custom_call.1} parent=39 // pred_fallthru
          _
      $region40: #{tpu_custom_call.1} parent=5 // pred_fallthru
        _
      %p1928 = scmp.le.s32.totalorder 2, %s14
      // Predicated region
      $region45: #{tpu_custom_call.1} parent=5 // pred_check
        %p1929 = pneg %p1928
      $region46: #{tpu_custom_call.1} parent=5 // pred_check_branch
        %1931 = sbr.rel (%p1929) target = $region48
      $region47: #{tpu_custom_call.1} parent=5 // pred_region
        %s1932 = ssub.s32 %s14, 2
        // Predicated region
        $region49: #{tpu_custom_call.1} parent=47 // pred_check
          %p1933 = pneg %p153
        $region50: #{tpu_custom_call.1} parent=47 // pred_check_branch
          %1935 = sbr.rel (%p1933) target = $region52
        $region51: #{tpu_custom_call.1} parent=47 // pred_region
          %s1936 = sand.u32 %s138, 1
          %s1937 = scalar_lea.sflag [#allocation3], %s1936
          %s1938 = sand.u32 %s138, 1
          %s1939 = smul.addr %s1938, 256
          %s1940 = scalar_lea.vmem [#allocation2], %s1939
          %1941 = dma.done %s1937, 4096
        $region52: #{tpu_custom_call.1} parent=47 // pred_fallthru
          _
      $region48: #{tpu_custom_call.1} parent=5 // pred_fallthru
        _
    $region6: #{tpu_custom_call.1} parent=1 // loop_footer
      %s18 = sadd.s32 1, %s14
    $region7: #{tpu_custom_call.1} parent=1 // loop_footer_branch
      %13 = sbr.rel target = $region3
    $region8: #{tpu_custom_call.1} parent=1 // loop_exit
      _
    %1942 = vsyncpa [#allocation3], 1
    %s1943 = scalar_lea.sflag [#allocation3], 1
    %1944 = vsyncpa %s1943, 1

</llo_original>
